<compile_context>
chip_gen: v7x
topology: tpu7x:2x2x1
jax: 0.10.0
libtpu: 0.0.40
codegen_flags: <defaults>
</compile_context>

<pallas_src>
import jax
import jax.numpy as jnp
from jax.experimental import pallas as pl
from jax.experimental.pallas import tpu as pltpu

LANE = 128  # vreg lane width; weight feature dims padded to multiples of this


def _round_up(n, m):
    return ((n + m - 1) // m) * m


def _autoencoder_kernel(x_ref,
                        w1_ref, b1_ref,
                        w2_ref, b2_ref,
                        w3_ref, b3_ref,
                        w4_ref, b4_ref,
                        o_ref):
    # x is streamed as bf16; MXU matmuls accumulate in f32; bias-add / ReLU on the VPU in f32.
    x = x_ref[...]
    h = jnp.dot(x, w1_ref[...], preferred_element_type=jnp.float32)
    h = jnp.maximum(h + b1_ref[...], 0.0).astype(jnp.bfloat16)

    z = jnp.dot(h, w2_ref[...], preferred_element_type=jnp.float32)
    z = jnp.maximum(z + b2_ref[...], 0.0).astype(jnp.bfloat16)

    g = jnp.dot(z, w3_ref[...], preferred_element_type=jnp.float32)
    g = jnp.maximum(g + b3_ref[...], 0.0).astype(jnp.bfloat16)

    y = jnp.dot(g, w4_ref[...], preferred_element_type=jnp.float32)
    o_ref[...] = (y + b4_ref[...]).astype(o_ref.dtype)


def _pick_batch_tile(B, input_dim, h_p, e_p, budget_bytes=24 * 1024 * 1024):
    """Largest power-of-two tile <= 2048 fitting the VMEM budget, keeping >=4 grid steps."""
    w_bytes = 2 * 2 * (input_dim * h_p + h_p * e_p + e_p * h_p + h_p * input_dim)  # bf16, x2 buf
    b_bytes = 2 * 4 * (2 * h_p + e_p + input_dim)

    def footprint(t):
        stream = 2 * t * input_dim * (2 + 4)                 # bf16 x + f32 out, double-buffered
        temps = t * (2 * h_p + e_p + input_dim) * (4 + 2)    # f32 + bf16 intermediates
        return stream + temps + w_bytes + b_bytes

    tile = 2048
    while tile > 16 and footprint(tile) > budget_bytes:
        tile //= 2
    # Keep >= 4 grid steps (>= 2 per TensorCore on v7x with a 'parallel' batch axis)
    # when the batch is large enough to allow it.
    while tile > 64 and pl.cdiv(B, tile) < 4:
        tile //= 2
    return max(16, tile)


def prepare_params(params):
    """One-time weight prep (hoisted out of the hot path): cast to bf16 and lane-pad the
    hidden/emb dims of the weights; biases stay f32. Zero padding keeps semantics exact
    (padded hidden columns are relu(0)=0 and contribute nothing downstream)."""
    input_dim, hidden_dim = params["w1"].shape
    emb_dim = params["w2"].shape[1]
    assert params["w2"].shape[0] == hidden_dim
    assert params["w4"].shape == (hidden_dim, input_dim)

    h_p = _round_up(hidden_dim, LANE)
    e_p = _round_up(emb_dim, LANE)

    def pad2(a, rows, cols, dtype):
        a = a.astype(dtype)
        return jnp.pad(a, ((0, rows - a.shape[0]), (0, cols - a.shape[1])))

    return dict(
        w1=pad2(params["w1"], input_dim, h_p, jnp.bfloat16),
        b1=pad2(params["b1"], 1, h_p, jnp.float32),
        w2=pad2(params["w2"], h_p, e_p, jnp.bfloat16),
        b2=pad2(params["b2"], 1, e_p, jnp.float32),
        w3=pad2(params["w3"], e_p, h_p, jnp.bfloat16),
        b3=pad2(params["b3"], 1, h_p, jnp.float32),
        w4=pad2(params["w4"], h_p, input_dim, jnp.bfloat16),
        b4=pad2(params["b4"], 1, input_dim, jnp.float32),
    )


def autoencoder_forward(x, prepared, *, batch_tile=None):
    """x: (B, input_dim). prepared: output of prepare_params(). Returns (B, input_dim) f32."""
    B, input_dim = x.shape
    w1, b1 = prepared["w1"], prepared["b1"]
    w2, b2 = prepared["w2"], prepared["b2"]
    w3, b3 = prepared["w3"], prepared["b3"]
    w4, b4 = prepared["w4"], prepared["b4"]
    assert w1.shape[0] == input_dim and w4.shape[1] == input_dim
    h_p, e_p = w1.shape[1], w2.shape[1]

    if batch_tile is None:
        batch_tile = _pick_batch_tile(B, input_dim, h_p, e_p)
    batch_tile = min(batch_tile, _round_up(B, 8))
    batch_tile = max(8, _round_up(batch_tile, 8))
    grid = (pl.cdiv(B, batch_tile),)   # ragged last block: OOB rows masked on store

    # Stream activations as bf16 (halves input HBM bytes). No-op if caller already passes bf16;
    # in a real pipeline this cast fuses into the producer of x.
    x = x.astype(jnp.bfloat16)

    full = lambda shape: pl.BlockSpec(shape, lambda i: (0, 0))

    w_elems = input_dim * h_p + h_p * e_p + e_p * h_p + h_p * input_dim
    b_elems = 2 * h_p + e_p + input_dim
    cost = pl.CostEstimate(
        flops=2 * B * w_elems,
        transcendentals=0,
        bytes_accessed=B * input_dim * (2 + 4) + w_elems * 2 + b_elems * 4,
    )

    return pl.pallas_call(
        _autoencoder_kernel,
        out_shape=jax.ShapeDtypeStruct((B, input_dim), jnp.float32),
        grid_spec=pltpu.PrefetchScalarGridSpec(
            num_scalar_prefetch=0,
            grid=grid,
            in_specs=[
                pl.BlockSpec((batch_tile, input_dim), lambda i: (i, 0)),
                full(w1.shape), full(b1.shape),
                full(w2.shape), full(b2.shape),
                full(w3.shape), full(b3.shape),
                full(w4.shape), full(b4.shape),
            ],
            out_specs=pl.BlockSpec((batch_tile, input_dim), lambda i: (i, 0)),
        ),
        compiler_params=pltpu.CompilerParams(
            dimension_semantics=("parallel",),
            vmem_limit_bytes=32 * 1024 * 1024,  # enforce the tile budget (v5e default is 16 MiB)
        ),
        cost_estimate=cost,
    )(x, w1, b1, w2, b2, w3, b3, w4, b4)


def init_params(key, input_dim, hidden_dim, emb_dim, dtype=jnp.float32):
    """PyTorch-Linear-style init (uniform +-1/sqrt(fan_in)); weights stored as (in, out)."""
    def linear(k, fan_in, fan_out):
        kw, kb = jax.random.split(k)
        bound = 1.0 / (fan_in ** 0.5)
        w = jax.random.uniform(kw, (fan_in, fan_out), dtype, -bound, bound)
        b = jax.random.uniform(kb, (1, fan_out), dtype, -bound, bound)
        return w, b

    k1, k2, k3, k4 = jax.random.split(key, 4)
    w1, b1 = linear(k1, input_dim, hidden_dim)
    w2, b2 = linear(k2, hidden_dim, emb_dim)
    w3, b3 = linear(k3, emb_dim, hidden_dim)
    w4, b4 = linear(k4, hidden_dim, input_dim)
    return dict(w1=w1, b1=b1, w2=w2, b2=b2, w3=w3, b3=b3, w4=w4, b4=b4)


def reference_forward(x, p):
    """Pure-JAX f32 reference for correctness check."""
    h = jax.nn.relu(x @ p["w1"] + p["b1"])
    z = jax.nn.relu(h @ p["w2"] + p["b2"])
    g = jax.nn.relu(z @ p["w3"] + p["b3"])
    return g @ p["w4"] + p["b4"]


# TODO(synk): fit()/transform() (Adam training loop, DataLoader) are host-side utilities with
# no Pallas equivalent; only the forward pass is implemented here.

if __name__ == "__main__":
    key = jax.random.PRNGKey(0)
    k_x, k_p = jax.random.split(key)

    # Ragged batch (not a tile multiple) to exercise the masked last block; tile picker
    # selects 512 -> grid=(4,) (>= 2 steps per TensorCore on v7x).
    batch, input_dim, hidden_dim, emb_dim = 2000, 32, 64, 16
    x = jax.random.normal(k_x, (batch, input_dim), jnp.float32)
    params = init_params(k_p, input_dim, hidden_dim, emb_dim)

    prepared = prepare_params(params)               # one-time weight cast/pad
    fwd = jax.jit(autoencoder_forward)

    out = jax.block_until_ready(fwd(x, prepared))

    ref = reference_forward(x, params)
    assert out.shape == (batch, input_dim)
    assert out.dtype == jnp.float32
    # bf16 MXU inputs with f32 accumulation -> loosened tolerance vs. f32 reference.
    assert jnp.allclose(out, ref, atol=5e-2, rtol=5e-2)

    print("KERNEL_OK")
</pallas_src>

<mosaic_0001>
module attributes {stable_mosaic.version = 11 : i64} {
  func.func @_autoencoder_kernel(%arg0: i32, %arg1: memref<512x32xbf16, #tpu.memory_space<vmem>>, %arg2: memref<32x128xbf16, #tpu.memory_space<vmem>>, %arg3: memref<1x128xf32, #tpu.memory_space<vmem>>, %arg4: memref<128x128xbf16, #tpu.memory_space<vmem>>, %arg5: memref<1x128xf32, #tpu.memory_space<vmem>>, %arg6: memref<128x128xbf16, #tpu.memory_space<vmem>>, %arg7: memref<1x128xf32, #tpu.memory_space<vmem>>, %arg8: memref<128x32xbf16, #tpu.memory_space<vmem>>, %arg9: memref<1x32xf32, #tpu.memory_space<vmem>>, %arg10: memref<512x32xf32, #tpu.memory_space<vmem>>) attributes {dimension_semantics = [#tpu.dimension_semantics<parallel>], iteration_bounds = array<i64: 4>, scalar_prefetch = 0 : i64, scratch_operands = 0 : i64, tpu.core_type = #tpu.core_type<tc>, window_params = [{transform_indices = @transform_0, window_bounds = array<i64: 512, 32>}, {pipeline_mode = #tpu.pipeline_mode<synchronous>, transform_indices = @transform_1, window_bounds = array<i64: 32, 128>}, {pipeline_mode = #tpu.pipeline_mode<synchronous>, transform_indices = @transform_2, window_bounds = array<i64: 1, 128>}, {pipeline_mode = #tpu.pipeline_mode<synchronous>, transform_indices = @transform_3, window_bounds = array<i64: 128, 128>}, {pipeline_mode = #tpu.pipeline_mode<synchronous>, transform_indices = @transform_4, window_bounds = array<i64: 1, 128>}, {pipeline_mode = #tpu.pipeline_mode<synchronous>, transform_indices = @transform_5, window_bounds = array<i64: 128, 128>}, {pipeline_mode = #tpu.pipeline_mode<synchronous>, transform_indices = @transform_6, window_bounds = array<i64: 1, 128>}, {pipeline_mode = #tpu.pipeline_mode<synchronous>, transform_indices = @transform_7, window_bounds = array<i64: 128, 32>}, {pipeline_mode = #tpu.pipeline_mode<synchronous>, transform_indices = @transform_8, window_bounds = array<i64: 1, 32>}, {transform_indices = @transform_9, window_bounds = array<i64: 512, 32>}]} {
    %c0 = arith.constant 0 : index
    %c0_0 = arith.constant 0 : index
    %0 = vector.load %arg1[%c0, %c0_0] : memref<512x32xbf16, #tpu.memory_space<vmem>>, vector<512x32xbf16>
    %c0_1 = arith.constant 0 : index
    %c0_2 = arith.constant 0 : index
    %1 = vector.load %arg2[%c0_1, %c0_2] : memref<32x128xbf16, #tpu.memory_space<vmem>>, vector<32x128xbf16>
    %cst = arith.constant dense<0.000000e+00> : vector<512x128xf32>
    %2 = tpu.matmul %0, %1, %cst {dimension_numbers = #tpu.dot_dimension_numbers<[1], [0], [0], [1], [0, 0, 1, 1], [], []>} : vector<512x32xbf16>, vector<32x128xbf16>, vector<512x128xf32> -> vector<512x128xf32>
    %c0_3 = arith.constant 0 : index
    %c0_4 = arith.constant 0 : index
    %3 = vector.load %arg3[%c0_3, %c0_4] : memref<1x128xf32, #tpu.memory_space<vmem>>, vector<1x128xf32>
    %4 = vector.broadcast %3 : vector<1x128xf32> to vector<512x128xf32>
    %5 = arith.addf %2, %4 : vector<512x128xf32>
    %cst_5 = arith.constant 0.000000e+00 : f32
    %6 = vector.broadcast %cst_5 : f32 to vector<512x128xf32>
    %7 = arith.maximumf %5, %6 : vector<512x128xf32>
    %8 = arith.truncf %7 : vector<512x128xf32> to vector<512x128xbf16>
    %c0_6 = arith.constant 0 : index
    %c0_7 = arith.constant 0 : index
    %9 = vector.load %arg4[%c0_6, %c0_7] : memref<128x128xbf16, #tpu.memory_space<vmem>>, vector<128x128xbf16>
    %cst_8 = arith.constant dense<0.000000e+00> : vector<512x128xf32>
    %10 = tpu.matmul %8, %9, %cst_8 {dimension_numbers = #tpu.dot_dimension_numbers<[1], [0], [0], [1], [0, 0, 1, 1], [], []>} : vector<512x128xbf16>, vector<128x128xbf16>, vector<512x128xf32> -> vector<512x128xf32>
    %c0_9 = arith.constant 0 : index
    %c0_10 = arith.constant 0 : index
    %11 = vector.load %arg5[%c0_9, %c0_10] : memref<1x128xf32, #tpu.memory_space<vmem>>, vector<1x128xf32>
    %12 = vector.broadcast %11 : vector<1x128xf32> to vector<512x128xf32>
    %13 = arith.addf %10, %12 : vector<512x128xf32>
    %cst_11 = arith.constant 0.000000e+00 : f32
    %14 = vector.broadcast %cst_11 : f32 to vector<512x128xf32>
    %15 = arith.maximumf %13, %14 : vector<512x128xf32>
    %16 = arith.truncf %15 : vector<512x128xf32> to vector<512x128xbf16>
    %c0_12 = arith.constant 0 : index
    %c0_13 = arith.constant 0 : index
    %17 = vector.load %arg6[%c0_12, %c0_13] : memref<128x128xbf16, #tpu.memory_space<vmem>>, vector<128x128xbf16>
    %cst_14 = arith.constant dense<0.000000e+00> : vector<512x128xf32>
    %18 = tpu.matmul %16, %17, %cst_14 {dimension_numbers = #tpu.dot_dimension_numbers<[1], [0], [0], [1], [0, 0, 1, 1], [], []>} : vector<512x128xbf16>, vector<128x128xbf16>, vector<512x128xf32> -> vector<512x128xf32>
    %c0_15 = arith.constant 0 : index
    %c0_16 = arith.constant 0 : index
    %19 = vector.load %arg7[%c0_15, %c0_16] : memref<1x128xf32, #tpu.memory_space<vmem>>, vector<1x128xf32>
    %20 = vector.broadcast %19 : vector<1x128xf32> to vector<512x128xf32>
    %21 = arith.addf %18, %20 : vector<512x128xf32>
    %cst_17 = arith.constant 0.000000e+00 : f32
    %22 = vector.broadcast %cst_17 : f32 to vector<512x128xf32>
    %23 = arith.maximumf %21, %22 : vector<512x128xf32>
    %24 = arith.truncf %23 : vector<512x128xf32> to vector<512x128xbf16>
    %c0_18 = arith.constant 0 : index
    %c0_19 = arith.constant 0 : index
    %25 = vector.load %arg8[%c0_18, %c0_19] : memref<128x32xbf16, #tpu.memory_space<vmem>>, vector<128x32xbf16>
    %cst_20 = arith.constant dense<0.000000e+00> : vector<512x32xf32>
    %26 = tpu.matmul %24, %25, %cst_20 {dimension_numbers = #tpu.dot_dimension_numbers<[1], [0], [0], [1], [0, 0, 1, 1], [], []>} : vector<512x128xbf16>, vector<128x32xbf16>, vector<512x32xf32> -> vector<512x32xf32>
    %c0_21 = arith.constant 0 : index
    %c0_22 = arith.constant 0 : index
    %27 = vector.load %arg9[%c0_21, %c0_22] : memref<1x32xf32, #tpu.memory_space<vmem>>, vector<1x32xf32>
    %28 = vector.broadcast %27 : vector<1x32xf32> to vector<512x32xf32>
    %29 = arith.addf %26, %28 : vector<512x32xf32>
    %c0_23 = arith.constant 0 : index
    %c0_24 = arith.constant 0 : index
    %30 = vector.load %arg10[%c0_23, %c0_24] : memref<512x32xf32, #tpu.memory_space<vmem>>, vector<512x32xf32>
    tpu.vector_store %arg10[%c0_23, %c0_24], %29 {strides = array<i32>} : memref<512x32xf32, #tpu.memory_space<vmem>>, vector<512x32xf32>,
    return
  }
  func.func @transform_0(%arg0: i32) -> (i32, i32) {
    %c0_i32 = arith.constant 0 : i32
    %c0_i32_0 = arith.constant 0 : i32
    return %arg0, %c0_i32 : i32, i32
  }
  func.func @transform_1(%arg0: i32) -> (i32, i32) {
    %c0_i32 = arith.constant 0 : i32
    %c0_i32_0 = arith.constant 0 : i32
    %c0_i32_1 = arith.constant 0 : i32
    return %c0_i32, %c0_i32_0 : i32, i32
  }
  func.func @transform_2(%arg0: i32) -> (i32, i32) {
    %c0_i32 = arith.constant 0 : i32
    %c0_i32_0 = arith.constant 0 : i32
    %c0_i32_1 = arith.constant 0 : i32
    return %c0_i32, %c0_i32_0 : i32, i32
  }
  func.func @transform_3(%arg0: i32) -> (i32, i32) {
    %c0_i32 = arith.constant 0 : i32
    %c0_i32_0 = arith.constant 0 : i32
    %c0_i32_1 = arith.constant 0 : i32
    return %c0_i32, %c0_i32_0 : i32, i32
  }
  func.func @transform_4(%arg0: i32) -> (i32, i32) {
    %c0_i32 = arith.constant 0 : i32
    %c0_i32_0 = arith.constant 0 : i32
    %c0_i32_1 = arith.constant 0 : i32
    return %c0_i32, %c0_i32_0 : i32, i32
  }
  func.func @transform_5(%arg0: i32) -> (i32, i32) {
    %c0_i32 = arith.constant 0 : i32
    %c0_i32_0 = arith.constant 0 : i32
    %c0_i32_1 = arith.constant 0 : i32
    return %c0_i32, %c0_i32_0 : i32, i32
  }
  func.func @transform_6(%arg0: i32) -> (i32, i32) {
    %c0_i32 = arith.constant 0 : i32
    %c0_i32_0 = arith.constant 0 : i32
    %c0_i32_1 = arith.constant 0 : i32
    return %c0_i32, %c0_i32_0 : i32, i32
  }
  func.func @transform_7(%arg0: i32) -> (i32, i32) {
    %c0_i32 = arith.constant 0 : i32
    %c0_i32_0 = arith.constant 0 : i32
    %c0_i32_1 = arith.constant 0 : i32
    return %c0_i32, %c0_i32_0 : i32, i32
  }
  func.func @transform_8(%arg0: i32) -> (i32, i32) {
    %c0_i32 = arith.constant 0 : i32
    %c0_i32_0 = arith.constant 0 : i32
    %c0_i32_1 = arith.constant 0 : i32
    return %c0_i32, %c0_i32_0 : i32, i32
  }
  func.func @transform_9(%arg0: i32) -> (i32, i32) {
    %c0_i32 = arith.constant 0 : i32
    %c0_i32_0 = arith.constant 0 : i32
    return %arg0, %c0_i32 : i32, i32
  }
}

</mosaic_0001>

<llo_original>
// kernel: autoencoder_forward.1
$region0: #{autoencoder_forward.1}
  #allocation0 [shape = 'u32[]', space=smem, size = 0x4, offset = 0x4, fixed_abs, tag = 'smem constant byte address 0x4 - core index']
  #allocation1 [shape = 'u32[144,128]{1,0:T(1,128)}', space=vmem, size = 0x12000, scoped, tag = 'internal scratch']
  %s0 = inlined_call_operand.vmem [shape: bf16[2000,32], index: 0, kind: input, shape index: {}]
  %s1 = inlined_call_operand.vmem [shape: bf16[32,128], index: 1, kind: input, shape index: {}]
  %s2 = inlined_call_operand.vmem [shape: f32[1,128], index: 2, kind: input, shape index: {}]
  %s3 = inlined_call_operand.vmem [shape: bf16[128,128], index: 3, kind: input, shape index: {}]
  %s4 = inlined_call_operand.vmem [shape: f32[1,128], index: 4, kind: input, shape index: {}]
  %s5 = inlined_call_operand.vmem [shape: bf16[128,128], index: 5, kind: input, shape index: {}]
  %s6 = inlined_call_operand.vmem [shape: f32[1,128], index: 6, kind: input, shape index: {}]
  %s7 = inlined_call_operand.vmem [shape: bf16[128,32], index: 7, kind: input, shape index: {}]
  %s8 = inlined_call_operand.vmem [shape: f32[1,32], index: 8, kind: input, shape index: {}]
  %s9 = inlined_call_operand.vmem [shape: f32[2000,32], index: 9, kind: output, shape index: {}]
  %s10 = sld [smem:[#allocation0]]
  $region117: #{autoencoder_forward.1} parent=0
    _
  %s12 = ssub.s32 1, %s10
  %s13 = scalar_select 0, %s12, %s10
  $region1: #{autoencoder_forward.1} parent=0
    #allocation2 [shape = 'u8[524288]{0}', space=vmem, size = 0x80000, scoped, tag = 'output window, operand 0']
    loop: start=0, step=1, limit=6
    $region2: #{autoencoder_forward.1} parent=1 // loop_pre_header
      _
    $region3: #{autoencoder_forward.1} parent=1 // loop_header
      %s15 = sphi 0, %s19
      %p16 = scmp.ge.s32.totalorder %s15, 6
      %s25 = sphi 0, %s27
      %s28 = sphi 0, %s25
      %s29 = sphi 0, %s28
      %s45 = sphi 0, %s29
      %s49 = sphi 0, %s49
      %s51 = sphi 0, %s49
      %s52 = sphi 0, %s51
      %s66 = sphi 0, %s52
      %s70 = sphi 0, %s70
      %s72 = sphi 0, %s70
      %s73 = sphi 0, %s72
      %s87 = sphi 0, %s73
      %s91 = sphi 0, %s91
      %s93 = sphi 0, %s91
      %s94 = sphi 0, %s93
      %s108 = sphi 0, %s94
      %s112 = sphi 0, %s112
      %s114 = sphi 0, %s112
      %s115 = sphi 0, %s114
      %s129 = sphi 0, %s115
      %s133 = sphi 0, %s133
      %s135 = sphi 0, %s133
      %s136 = sphi 0, %s135
      %s150 = sphi 0, %s136
      %s154 = sphi 0, %s154
      %s156 = sphi 0, %s154
      %s157 = sphi 0, %s156
      %s171 = sphi 0, %s157
      %s175 = sphi 0, %s175
      %s177 = sphi 0, %s175
      %s178 = sphi 0, %s177
      %s192 = sphi 0, %s178
      %s196 = sphi 0, %s196
      %s198 = sphi 0, %s196
      %s199 = sphi 0, %s198
      %s213 = sphi 0, %s199
      %s219 = sphi 0, %s221
      %s222 = sphi 0, %s219
      %s223 = sphi 0, %s222
      %s239 = sphi 0, %s223
    $region4: #{autoencoder_forward.1} parent=1 // loop_header_branch
      %18 = sbr.rel (%p16) target = $region8
    $region5: #{autoencoder_forward.1} parent=1 // loop_body
      %s20 = ssub.s32 %s15, 1
      %s21 = ssub.s32 %s15, 2
      %s22 = sadd.s32 %s15, 1
      %s23 = ssub.s32 %s15, %s22
      %p24 = scmp.eq.s32.totalorder %s23, 0
      %s26 = sadd.s32 %s25, 1
      %s27 = scalar_select %p24, %s25, %s26
      %p30 = pneg %p24
      %p31 = scmp.eq.s32.totalorder %s15, 3
      %p32 = por %p30, %p31
      %p33 = scmp.ne.s32.totalorder %s25, %s28
      %p34 = scmp.eq.s32.totalorder %s15, 0
      %p35 = por %p33, %p34
      %p36 = scmp.ne.s32.totalorder %s25, %s28
      %p37 = scmp.eq.s32.totalorder %s20, 3
      %p38 = por %p36, %p37
      %p39 = scmp.ne.s32.totalorder %s28, %s29
      %p40 = scmp.eq.s32.totalorder %s20, 0
      %p41 = por %p39, %p40
      %p42 = scmp.ne.s32.totalorder %s28, %s29
      %p43 = scmp.eq.s32.totalorder %s21, 3
      %p44 = por %p42, %p43
      %p46 = scmp.ne.s32.totalorder %s29, %s45
      %p47 = scmp.eq.s32.totalorder %s21, 0
      %p48 = por %p46, %p47
      %s50 = sadd.s32 %s49, 1
      %p53 = scmp.eq.s32.totalorder %s15, 3
      %p54 = scmp.ne.s32.totalorder %s49, %s51
      %p55 = scmp.eq.s32.totalorder %s15, 0
      %p56 = por %p54, %p55
      %p57 = scmp.ne.s32.totalorder %s49, %s51
      %p58 = scmp.eq.s32.totalorder %s20, 3
      %p59 = por %p57, %p58
      %p60 = scmp.ne.s32.totalorder %s51, %s52
      %p61 = scmp.eq.s32.totalorder %s20, 0
      %p62 = por %p60, %p61
      %p63 = scmp.ne.s32.totalorder %s51, %s52
      %p64 = scmp.eq.s32.totalorder %s21, 3
      %p65 = por %p63, %p64
      %p67 = scmp.ne.s32.totalorder %s52, %s66
      %p68 = scmp.eq.s32.totalorder %s21, 0
      %p69 = por %p67, %p68
      %s71 = sadd.s32 %s70, 1
      %p74 = scmp.eq.s32.totalorder %s15, 3
      %p75 = scmp.ne.s32.totalorder %s70, %s72
      %p76 = scmp.eq.s32.totalorder %s15, 0
      %p77 = por %p75, %p76
      %p78 = scmp.ne.s32.totalorder %s70, %s72
      %p79 = scmp.eq.s32.totalorder %s20, 3
      %p80 = por %p78, %p79
      %p81 = scmp.ne.s32.totalorder %s72, %s73
      %p82 = scmp.eq.s32.totalorder %s20, 0
      %p83 = por %p81, %p82
      %p84 = scmp.ne.s32.totalorder %s72, %s73
      %p85 = scmp.eq.s32.totalorder %s21, 3
      %p86 = por %p84, %p85
      %p88 = scmp.ne.s32.totalorder %s73, %s87
      %p89 = scmp.eq.s32.totalorder %s21, 0
      %p90 = por %p88, %p89
      %s92 = sadd.s32 %s91, 1
      %p95 = scmp.eq.s32.totalorder %s15, 3
      %p96 = scmp.ne.s32.totalorder %s91, %s93
      %p97 = scmp.eq.s32.totalorder %s15, 0
      %p98 = por %p96, %p97
      %p99 = scmp.ne.s32.totalorder %s91, %s93
      %p100 = scmp.eq.s32.totalorder %s20, 3
      %p101 = por %p99, %p100
      %p102 = scmp.ne.s32.totalorder %s93, %s94
      %p103 = scmp.eq.s32.totalorder %s20, 0
      %p104 = por %p102, %p103
      %p105 = scmp.ne.s32.totalorder %s93, %s94
      %p106 = scmp.eq.s32.totalorder %s21, 3
      %p107 = por %p105, %p106
      %p109 = scmp.ne.s32.totalorder %s94, %s108
      %p110 = scmp.eq.s32.totalorder %s21, 0
      %p111 = por %p109, %p110
      %s113 = sadd.s32 %s112, 1
      %p116 = scmp.eq.s32.totalorder %s15, 3
      %p117 = scmp.ne.s32.totalorder %s112, %s114
      %p118 = scmp.eq.s32.totalorder %s15, 0
      %p119 = por %p117, %p118
      %p120 = scmp.ne.s32.totalorder %s112, %s114
      %p121 = scmp.eq.s32.totalorder %s20, 3
      %p122 = por %p120, %p121
      %p123 = scmp.ne.s32.totalorder %s114, %s115
      %p124 = scmp.eq.s32.totalorder %s20, 0
      %p125 = por %p123, %p124
      %p126 = scmp.ne.s32.totalorder %s114, %s115
      %p127 = scmp.eq.s32.totalorder %s21, 3
      %p128 = por %p126, %p127
      %p130 = scmp.ne.s32.totalorder %s115, %s129
      %p131 = scmp.eq.s32.totalorder %s21, 0
      %p132 = por %p130, %p131
      %s134 = sadd.s32 %s133, 1
      %p137 = scmp.eq.s32.totalorder %s15, 3
      %p138 = scmp.ne.s32.totalorder %s133, %s135
      %p139 = scmp.eq.s32.totalorder %s15, 0
      %p140 = por %p138, %p139
      %p141 = scmp.ne.s32.totalorder %s133, %s135
      %p142 = scmp.eq.s32.totalorder %s20, 3
      %p143 = por %p141, %p142
      %p144 = scmp.ne.s32.totalorder %s135, %s136
      %p145 = scmp.eq.s32.totalorder %s20, 0
      %p146 = por %p144, %p145
      %p147 = scmp.ne.s32.totalorder %s135, %s136
      %p148 = scmp.eq.s32.totalorder %s21, 3
      %p149 = por %p147, %p148
      %p151 = scmp.ne.s32.totalorder %s136, %s150
      %p152 = scmp.eq.s32.totalorder %s21, 0
      %p153 = por %p151, %p152
      %s155 = sadd.s32 %s154, 1
      %p158 = scmp.eq.s32.totalorder %s15, 3
      %p159 = scmp.ne.s32.totalorder %s154, %s156
      %p160 = scmp.eq.s32.totalorder %s15, 0
      %p161 = por %p159, %p160
      %p162 = scmp.ne.s32.totalorder %s154, %s156
      %p163 = scmp.eq.s32.totalorder %s20, 3
      %p164 = por %p162, %p163
      %p165 = scmp.ne.s32.totalorder %s156, %s157
      %p166 = scmp.eq.s32.totalorder %s20, 0
      %p167 = por %p165, %p166
      %p168 = scmp.ne.s32.totalorder %s156, %s157
      %p169 = scmp.eq.s32.totalorder %s21, 3
      %p170 = por %p168, %p169
      %p172 = scmp.ne.s32.totalorder %s157, %s171
      %p173 = scmp.eq.s32.totalorder %s21, 0
      %p174 = por %p172, %p173
      %s176 = sadd.s32 %s175, 1
      %p179 = scmp.eq.s32.totalorder %s15, 3
      %p180 = scmp.ne.s32.totalorder %s175, %s177
      %p181 = scmp.eq.s32.totalorder %s15, 0
      %p182 = por %p180, %p181
      %p183 = scmp.ne.s32.totalorder %s175, %s177
      %p184 = scmp.eq.s32.totalorder %s20, 3
      %p185 = por %p183, %p184
      %p186 = scmp.ne.s32.totalorder %s177, %s178
      %p187 = scmp.eq.s32.totalorder %s20, 0
      %p188 = por %p186, %p187
      %p189 = scmp.ne.s32.totalorder %s177, %s178
      %p190 = scmp.eq.s32.totalorder %s21, 3
      %p191 = por %p189, %p190
      %p193 = scmp.ne.s32.totalorder %s178, %s192
      %p194 = scmp.eq.s32.totalorder %s21, 0
      %p195 = por %p193, %p194
      %s197 = sadd.s32 %s196, 1
      %p200 = scmp.eq.s32.totalorder %s15, 3
      %p201 = scmp.ne.s32.totalorder %s196, %s198
      %p202 = scmp.eq.s32.totalorder %s15, 0
      %p203 = por %p201, %p202
      %p204 = scmp.ne.s32.totalorder %s196, %s198
      %p205 = scmp.eq.s32.totalorder %s20, 3
      %p206 = por %p204, %p205
      %p207 = scmp.ne.s32.totalorder %s198, %s199
      %p208 = scmp.eq.s32.totalorder %s20, 0
      %p209 = por %p207, %p208
      %p210 = scmp.ne.s32.totalorder %s198, %s199
      %p211 = scmp.eq.s32.totalorder %s21, 3
      %p212 = por %p210, %p211
      %p214 = scmp.ne.s32.totalorder %s199, %s213
      %p215 = scmp.eq.s32.totalorder %s21, 0
      %p216 = por %p214, %p215
      %s217 = ssub.s32 %s15, %s22
      %p218 = scmp.eq.s32.totalorder %s217, 0
      %s220 = sadd.s32 %s219, 1
      %s221 = scalar_select %p218, %s219, %s220
      %p224 = pneg %p218
      %p225 = scmp.eq.s32.totalorder %s15, 3
      %p226 = por %p224, %p225
      %p227 = scmp.ne.s32.totalorder %s219, %s222
      %p228 = scmp.eq.s32.totalorder %s15, 0
      %p229 = por %p227, %p228
      %p230 = scmp.ne.s32.totalorder %s219, %s222
      %p231 = scmp.eq.s32.totalorder %s20, 3
      %p232 = por %p230, %p231
      %p233 = scmp.ne.s32.totalorder %s222, %s223
      %p234 = scmp.eq.s32.totalorder %s20, 0
      %p235 = por %p233, %p234
      %p236 = scmp.ne.s32.totalorder %s222, %s223
      %p237 = scmp.eq.s32.totalorder %s21, 3
      %p238 = por %p236, %p237
      %p240 = scmp.ne.s32.totalorder %s223, %s239
      %p241 = scmp.eq.s32.totalorder %s21, 0
      %p242 = por %p240, %p241
      %p243 = scmp.le.s32.totalorder 1, %s15
      %p244 = scmp.lt.s32.totalorder %s15, 5
      %p245 = pnand %p243, %p244
      %p246 = pneg %p245
      // Predicated region
      $region9: #{autoencoder_forward.1} parent=5 // pred_check
        _
      $region10: #{autoencoder_forward.1} parent=5 // pred_check_branch
        %248 = sbr.rel (%p245) target = $region12
      $region11: #{autoencoder_forward.1} parent=5 // pred_region
        %s249 = ssub.s32 %s15, 1
        // Predicated region
        $region13: #{autoencoder_forward.1} parent=11 // pred_check
          %p250 = pneg %p62
        $region14: #{autoencoder_forward.1} parent=11 // pred_check_branch
          %252 = sbr.rel (%p250) target = $region16
        $region15: #{autoencoder_forward.1} parent=11 // pred_region
          _
        $region16: #{autoencoder_forward.1} parent=11 // pred_fallthru
          _
        // Predicated region
        $region17: #{autoencoder_forward.1} parent=11 // pred_check
          %p253 = pneg %p83
        $region18: #{autoencoder_forward.1} parent=11 // pred_check_branch
          %255 = sbr.rel (%p253) target = $region20
        $region19: #{autoencoder_forward.1} parent=11 // pred_region
          _
        $region20: #{autoencoder_forward.1} parent=11 // pred_fallthru
          _
        // Predicated region
        $region21: #{autoencoder_forward.1} parent=11 // pred_check
          %p256 = pneg %p104
        $region22: #{autoencoder_forward.1} parent=11 // pred_check_branch
          %258 = sbr.rel (%p256) target = $region24
        $region23: #{autoencoder_forward.1} parent=11 // pred_region
          _
        $region24: #{autoencoder_forward.1} parent=11 // pred_fallthru
          _
        // Predicated region
        $region25: #{autoencoder_forward.1} parent=11 // pred_check
          %p259 = pneg %p125
        $region26: #{autoencoder_forward.1} parent=11 // pred_check_branch
          %261 = sbr.rel (%p259) target = $region28
        $region27: #{autoencoder_forward.1} parent=11 // pred_region
          _
        $region28: #{autoencoder_forward.1} parent=11 // pred_fallthru
          _
        // Predicated region
        $region29: #{autoencoder_forward.1} parent=11 // pred_check
          %p262 = pneg %p146
        $region30: #{autoencoder_forward.1} parent=11 // pred_check_branch
          %264 = sbr.rel (%p262) target = $region32
        $region31: #{autoencoder_forward.1} parent=11 // pred_region
          _
        $region32: #{autoencoder_forward.1} parent=11 // pred_fallthru
          _
        // Predicated region
        $region33: #{autoencoder_forward.1} parent=11 // pred_check
          %p265 = pneg %p167
        $region34: #{autoencoder_forward.1} parent=11 // pred_check_branch
          %267 = sbr.rel (%p265) target = $region36
        $region35: #{autoencoder_forward.1} parent=11 // pred_region
          _
        $region36: #{autoencoder_forward.1} parent=11 // pred_fallthru
          _
        // Predicated region
        $region37: #{autoencoder_forward.1} parent=11 // pred_check
          %p268 = pneg %p188
        $region38: #{autoencoder_forward.1} parent=11 // pred_check_branch
          %270 = sbr.rel (%p268) target = $region40
        $region39: #{autoencoder_forward.1} parent=11 // pred_region
          _
        $region40: #{autoencoder_forward.1} parent=11 // pred_fallthru
          _
        // Predicated region
        $region41: #{autoencoder_forward.1} parent=11 // pred_check
          %p271 = pneg %p209
        $region42: #{autoencoder_forward.1} parent=11 // pred_check_branch
          %273 = sbr.rel (%p271) target = $region44
        $region43: #{autoencoder_forward.1} parent=11 // pred_region
          _
        $region44: #{autoencoder_forward.1} parent=11 // pred_fallthru
          _
      $region12: #{autoencoder_forward.1} parent=5 // pred_fallthru
        _
      %p274 = scmp.lt.s32.totalorder %s15, 4
      // Predicated region
      $region45: #{autoencoder_forward.1} parent=5 // pred_check
        %p275 = pneg %p274
      $region46: #{autoencoder_forward.1} parent=5 // pred_check_branch
        %277 = sbr.rel (%p275) target = $region48
      $region47: #{autoencoder_forward.1} parent=5 // pred_region
        // Predicated region
        $region49: #{autoencoder_forward.1} parent=47 // pred_check
          %p278 = pneg %p35
        $region50: #{autoencoder_forward.1} parent=47 // pred_check_branch
          %280 = sbr.rel (%p278) target = $region52
        $region51: #{autoencoder_forward.1} parent=47 // pred_region
          %s281 = smul.u32 64, %s15
          %s282 = ssub.s32 250, %s281
          %p283 = scmp.lt.s32.totalorder %s282, 64
          %s284 = scalar_select %p283, %s282, 64
          %s285 = smul.u32 64, %s284
          %p286 = scmp.lt.s32.totalorder %s281, 249
          %s287 = scalar_select %p286, %s281, 249
          %s288 = smul.addr %s287, 4
          %s289 = scalar_lea.vmem %s0, %s288
          %s290 = smul.u32 64, %s15
          %s291 = ssub.s32 250, %s290
          %p292 = scmp.lt.s32.totalorder %s291, 64
          %s293 = scalar_select %p292, %s291, 64
          %s294 = smul.u32 64, %s293
        $region52: #{autoencoder_forward.1} parent=47 // pred_fallthru
          _
      $region48: #{autoencoder_forward.1} parent=5 // pred_fallthru
        _
      %p295 = scmp.le.s32.totalorder 1, %s15
      %p296 = scmp.lt.s32.totalorder %s15, 5
      %p297 = pnand %p295, %p296
      %p298 = pneg %p297
      // Predicated region
      $region53: #{autoencoder_forward.1} parent=5 // pred_check
        _
      $region54: #{autoencoder_forward.1} parent=5 // pred_check_branch
        %300 = sbr.rel (%p297) target = $region56
      $region55: #{autoencoder_forward.1} parent=5 // pred_region
        %s301 = ssub.s32 %s15, 1
        %s302 = smul.u32 64, %s20
        %s303 = ssub.s32 250, %s302
        %p304 = scmp.lt.s32.totalorder %s303, 64
        %s305 = scalar_select %p304, %s303, 64
        %s306 = smul.u32 64, %s305
        %p307 = scmp.lt.s32.totalorder %s302, 249
        %s308 = scalar_select %p307, %s302, 249
        %s309 = smul.addr %s308, 4
        %s310 = scalar_lea.vmem %s0, %s309
        %p311 = pneg %p41
        %p312 = pneg %p38
        %p313 = pneg %p62
        %p314 = pneg %p59
        %p315 = pneg %p83
        %p316 = pneg %p80
        %p317 = pneg %p104
        %p318 = pneg %p101
        %p319 = pneg %p125
        %p320 = pneg %p122
        %p321 = pneg %p146
        %p322 = pneg %p143
        %p323 = pneg %p167
        %p324 = pneg %p164
        %p325 = pneg %p188
        %p326 = pneg %p185
        %p327 = pneg %p209
        %p328 = pneg %p206
        %p329 = pneg %p235
        %p330 = pneg %p232
        %s331 = sand.u32 %s222, 1
        %s332 = sand.u32 %s222, 1
        %s333 = smul.addr %s332, 512
        %s334 = scalar_lea.vmem [#allocation2], %s333
        %s335 = smul.u32 64, %s20
        %s336 = ssub.s32 250, %s335
        %p337 = scmp.lt.s32.totalorder %s336, 64
        %s338 = scalar_select %p337, %s336, 64
        %s339 = smul.u32 64, %s338
        %p340 = scmp.lt.s32.totalorder %s335, 249
        %s341 = scalar_select %p340, %s335, 249
        %s342 = smul.addr %s341, 4
        %s343 = scalar_lea.vmem %s0, %s342
        %s344 = smul.u32 64, %s20
        %s345 = ssub.s32 250, %s344
        %p346 = scmp.lt.s32.totalorder %s345, 64
        %s347 = scalar_select %p346, %s345, 64
        %s348 = smul.u32 64, %s347
        %s349 = smul.u32 64, %s20
        %s350 = ssub.s32 250, %s349
        %p351 = scmp.lt.s32.totalorder %s350, 64
        %s352 = scalar_select %p351, %s350, 64
        %s353 = smul.u32 128, %s352
        %v355 = vld [vmem:[%s343] sm:$0xf]
        %v356 = vld [vmem:[%s343 + $0x4] sm:$0xf]
        %v357 = vld [vmem:[%s343 + $0x8] sm:$0xf]
        %v358 = vld [vmem:[%s343 + $0xc] sm:$0xf]
        %v359 = vld [vmem:[%s343 + $0x10] sm:$0xf]
        %v360 = vld [vmem:[%s343 + $0x14] sm:$0xf]
        %v361 = vld [vmem:[%s343 + $0x18] sm:$0xf]
        %v362 = vld [vmem:[%s343 + $0x1c] sm:$0xf]
        %v363 = vld [vmem:[%s343 + $0x20] sm:$0xf]
        %v364 = vld [vmem:[%s343 + $0x24] sm:$0xf]
        %v365 = vld [vmem:[%s343 + $0x28] sm:$0xf]
        %v366 = vld [vmem:[%s343 + $0x2c] sm:$0xf]
        %v367 = vld [vmem:[%s343 + $0x30] sm:$0xf]
        %v368 = vld [vmem:[%s343 + $0x34] sm:$0xf]
        %v369 = vld [vmem:[%s343 + $0x38] sm:$0xf]
        %v370 = vld [vmem:[%s343 + $0x3c] sm:$0xf]
        %v371 = vld [vmem:[%s343 + $0x40] sm:$0xf]
        %v372 = vld [vmem:[%s343 + $0x44] sm:$0xf]
        %v373 = vld [vmem:[%s343 + $0x48] sm:$0xf]
        %v374 = vld [vmem:[%s343 + $0x4c] sm:$0xf]
        %v375 = vld [vmem:[%s343 + $0x50] sm:$0xf]
        %v376 = vld [vmem:[%s343 + $0x54] sm:$0xf]
        %v377 = vld [vmem:[%s343 + $0x58] sm:$0xf]
        %v378 = vld [vmem:[%s343 + $0x5c] sm:$0xf]
        %v379 = vld [vmem:[%s343 + $0x60] sm:$0xf]
        %v380 = vld [vmem:[%s343 + $0x64] sm:$0xf]
        %v381 = vld [vmem:[%s343 + $0x68] sm:$0xf]
        %v382 = vld [vmem:[%s343 + $0x6c] sm:$0xf]
        %v383 = vld [vmem:[%s343 + $0x70] sm:$0xf]
        %v384 = vld [vmem:[%s343 + $0x74] sm:$0xf]
        %v385 = vld [vmem:[%s343 + $0x78] sm:$0xf]
        %v386 = vld [vmem:[%s343 + $0x7c] sm:$0xf]
        %v387 = vld [vmem:[%s343 + $0x80] sm:$0xf]
        %v388 = vld [vmem:[%s343 + $0x84] sm:$0xf]
        %v389 = vld [vmem:[%s343 + $0x88] sm:$0xf]
        %v390 = vld [vmem:[%s343 + $0x8c] sm:$0xf]
        %v391 = vld [vmem:[%s343 + $0x90] sm:$0xf]
        %v392 = vld [vmem:[%s343 + $0x94] sm:$0xf]
        %v393 = vld [vmem:[%s343 + $0x98] sm:$0xf]
        %v394 = vld [vmem:[%s343 + $0x9c] sm:$0xf]
        %v395 = vld [vmem:[%s343 + $0xa0] sm:$0xf]
        %v396 = vld [vmem:[%s343 + $0xa4] sm:$0xf]
        %v397 = vld [vmem:[%s343 + $0xa8] sm:$0xf]
        %v398 = vld [vmem:[%s343 + $0xac] sm:$0xf]
        %v399 = vld [vmem:[%s343 + $0xb0] sm:$0xf]
        %v400 = vld [vmem:[%s343 + $0xb4] sm:$0xf]
        %v401 = vld [vmem:[%s343 + $0xb8] sm:$0xf]
        %v402 = vld [vmem:[%s343 + $0xbc] sm:$0xf]
        %v403 = vld [vmem:[%s343 + $0xc0] sm:$0xf]
        %v404 = vld [vmem:[%s343 + $0xc4] sm:$0xf]
        %v405 = vld [vmem:[%s343 + $0xc8] sm:$0xf]
        %v406 = vld [vmem:[%s343 + $0xcc] sm:$0xf]
        %v407 = vld [vmem:[%s343 + $0xd0] sm:$0xf]
        %v408 = vld [vmem:[%s343 + $0xd4] sm:$0xf]
        %v409 = vld [vmem:[%s343 + $0xd8] sm:$0xf]
        %v410 = vld [vmem:[%s343 + $0xdc] sm:$0xf]
        %v411 = vld [vmem:[%s343 + $0xe0] sm:$0xf]
        %v412 = vld [vmem:[%s343 + $0xe4] sm:$0xf]
        %v413 = vld [vmem:[%s343 + $0xe8] sm:$0xf]
        %v414 = vld [vmem:[%s343 + $0xec] sm:$0xf]
        %v415 = vld [vmem:[%s343 + $0xf0] sm:$0xf]
        %v416 = vld [vmem:[%s343 + $0xf4] sm:$0xf]
        %v417 = vld [vmem:[%s343 + $0xf8] sm:$0xf]
        %v418 = vld [vmem:[%s343 + $0xfc] sm:$0xf]
        %v419 = vld [vmem:[%s1] sm:$0xf]
        %v420 = vld [vmem:[%s1 + $0x4] sm:$0xf]
        %v421 = vld [vmem:[%s1 + $0x8] sm:$0xf]
        %v422 = vld [vmem:[%s1 + $0xc] sm:$0xf]
        %v423 = vld [vmem:[%s2] sm:$0x1]
        %v425 = vlaneseq
        %v426 = vshrl.u32 %v425, 7
        %v427 = vsub.s32 0, %v426
        %v428 = vrot.slane %v423, %v427
        %v494 = vunpack.c.l.b16 %v355
        %v495 = vunpack.c.l.b16 %v356
        %v496 = vunpack.c.l.b16 %v357
        %v497 = vunpack.c.l.b16 %v358
        %v498 = vunpack.c.l.b16 %v359
        %v499 = vunpack.c.l.b16 %v360
        %v500 = vunpack.c.l.b16 %v361
        %v501 = vunpack.c.l.b16 %v362
        %v502 = vunpack.c.l.b16 %v363
        %v503 = vunpack.c.l.b16 %v364
        %v504 = vunpack.c.l.b16 %v365
        %v505 = vunpack.c.l.b16 %v366
        %v506 = vunpack.c.l.b16 %v367
        %v507 = vunpack.c.l.b16 %v368
        %v508 = vunpack.c.l.b16 %v369
        %v509 = vunpack.c.l.b16 %v370
        %v510 = vunpack.c.l.b16 %v371
        %v511 = vunpack.c.l.b16 %v372
        %v512 = vunpack.c.l.b16 %v373
        %v513 = vunpack.c.l.b16 %v374
        %v514 = vunpack.c.l.b16 %v375
        %v515 = vunpack.c.l.b16 %v376
        %v516 = vunpack.c.l.b16 %v377
        %v517 = vunpack.c.l.b16 %v378
        %v518 = vunpack.c.l.b16 %v379
        %v519 = vunpack.c.l.b16 %v380
        %v520 = vunpack.c.l.b16 %v381
        %v521 = vunpack.c.l.b16 %v382
        %v522 = vunpack.c.l.b16 %v383
        %v523 = vunpack.c.l.b16 %v384
        %v524 = vunpack.c.l.b16 %v385
        %v525 = vunpack.c.l.b16 %v386
        %v526 = vunpack.c.l.b16 %v387
        %v527 = vunpack.c.l.b16 %v388
        %v528 = vunpack.c.l.b16 %v389
        %v529 = vunpack.c.l.b16 %v390
        %v530 = vunpack.c.l.b16 %v391
        %v531 = vunpack.c.l.b16 %v392
        %v532 = vunpack.c.l.b16 %v393
        %v533 = vunpack.c.l.b16 %v394
        %v534 = vunpack.c.l.b16 %v395
        %v535 = vunpack.c.l.b16 %v396
        %v536 = vunpack.c.l.b16 %v397
        %v537 = vunpack.c.l.b16 %v398
        %v538 = vunpack.c.l.b16 %v399
        %v539 = vunpack.c.l.b16 %v400
        %v540 = vunpack.c.l.b16 %v401
        %v541 = vunpack.c.l.b16 %v402
        %v542 = vunpack.c.l.b16 %v403
        %v543 = vunpack.c.l.b16 %v404
        %v544 = vunpack.c.l.b16 %v405
        %v545 = vunpack.c.l.b16 %v406
        %v546 = vunpack.c.l.b16 %v407
        %v547 = vunpack.c.l.b16 %v408
        %v548 = vunpack.c.l.b16 %v409
        %v549 = vunpack.c.l.b16 %v410
        %v550 = vunpack.c.l.b16 %v411
        %v551 = vunpack.c.l.b16 %v412
        %v552 = vunpack.c.l.b16 %v413
        %v553 = vunpack.c.l.b16 %v414
        %v554 = vunpack.c.l.b16 %v415
        %v555 = vunpack.c.l.b16 %v416
        %v556 = vunpack.c.l.b16 %v417
        %v557 = vunpack.c.l.b16 %v418
        %v558 = vpack.c.b16 %v495, %v494
        %v559 = vpack.c.b16 %v497, %v496
        %v560 = vpack.c.b16 %v499, %v498
        %v561 = vpack.c.b16 %v501, %v500
        %v562 = vpack.c.b16 %v503, %v502
        %v563 = vpack.c.b16 %v505, %v504
        %v564 = vpack.c.b16 %v507, %v506
        %v565 = vpack.c.b16 %v509, %v508
        %v566 = vpack.c.b16 %v511, %v510
        %v567 = vpack.c.b16 %v513, %v512
        %v568 = vpack.c.b16 %v515, %v514
        %v569 = vpack.c.b16 %v517, %v516
        %v570 = vpack.c.b16 %v519, %v518
        %v571 = vpack.c.b16 %v521, %v520
        %v572 = vpack.c.b16 %v523, %v522
        %v573 = vpack.c.b16 %v525, %v524
        %v574 = vpack.c.b16 %v527, %v526
        %v575 = vpack.c.b16 %v529, %v528
        %v576 = vpack.c.b16 %v531, %v530
        %v577 = vpack.c.b16 %v533, %v532
        %v578 = vpack.c.b16 %v535, %v534
        %v579 = vpack.c.b16 %v537, %v536
        %v580 = vpack.c.b16 %v539, %v538
        %v581 = vpack.c.b16 %v541, %v540
        %v582 = vpack.c.b16 %v543, %v542
        %v583 = vpack.c.b16 %v545, %v544
        %v584 = vpack.c.b16 %v547, %v546
        %v585 = vpack.c.b16 %v549, %v548
        %v586 = vpack.c.b16 %v551, %v550
        %v587 = vpack.c.b16 %v553, %v552
        %v588 = vpack.c.b16 %v555, %v554
        %v589 = vpack.c.b16 %v557, %v556
        %v594 = vunpack.c.l.b16 %v419
        %v595 = vunpack.c.l.b16 %v420
        %v596 = vunpack.c.l.b16 %v421
        %v597 = vunpack.c.l.b16 %v422
        %v598 = vpack.c.b16 %v595, %v594
        %v599 = vpack.c.b16 %v597, %v596
        %vm602 = vcmask 261120
        %v604 = vsel %vm602, %v558, 0
        %v607 = vsel %vm602, %v559, 0
        %v610 = vsel %vm602, %v560, 0
        %v613 = vsel %vm602, %v561, 0
        %v616 = vsel %vm602, %v562, 0
        %v619 = vsel %vm602, %v563, 0
        %v622 = vsel %vm602, %v564, 0
        %v625 = vsel %vm602, %v565, 0
        %v628 = vsel %vm602, %v566, 0
        %v631 = vsel %vm602, %v567, 0
        %v634 = vsel %vm602, %v568, 0
        %v637 = vsel %vm602, %v569, 0
        %v640 = vsel %vm602, %v570, 0
        %v643 = vsel %vm602, %v571, 0
        %v646 = vsel %vm602, %v572, 0
        %v649 = vsel %vm602, %v573, 0
        %v652 = vsel %vm602, %v574, 0
        %v655 = vsel %vm602, %v575, 0
        %v658 = vsel %vm602, %v576, 0
        %v661 = vsel %vm602, %v577, 0
        %v664 = vsel %vm602, %v578, 0
        %v667 = vsel %vm602, %v579, 0
        %v670 = vsel %vm602, %v580, 0
        %v673 = vsel %vm602, %v581, 0
        %v676 = vsel %vm602, %v582, 0
        %v679 = vsel %vm602, %v583, 0
        %v682 = vsel %vm602, %v584, 0
        %v685 = vsel %vm602, %v585, 0
        %v688 = vsel %vm602, %v586, 0
        %v691 = vsel %vm602, %v587, 0
        %v694 = vsel %vm602, %v588, 0
        %v697 = vsel %vm602, %v589, 0
        %699 = vmatprep.subr.bf16.mxu0 0
        %700 = vmatpush1.bf16.msra.mxu0 %v598
        %701 = vmatprep.subr.bf16.mxu0 0
        %702 = vmatpush1.bf16.msra.mxu0 %v599
        %703 = vmatprep.subr.bf16.mxu0 0
        %704 = vmatpush1.bf16.msra.mxu0 0
        %705 = vmatprep.subr.bf16.mxu0 0
        %706 = vmatpush1.bf16.msra.mxu0 0
        %707 = vmatprep.subr.bf16.mxu0 0
        %708 = vmatpush1.bf16.msra.mxu0 0
        %709 = vmatprep.subr.bf16.mxu0 0
        %710 = vmatpush1.bf16.msra.mxu0 0
        %711 = vmatprep.subr.bf16.mxu0 0
        %712 = vmatpush1.bf16.msra.mxu0 0
        %713 = vmatprep.subr.bf16.mxu0 0
        %714 = vmatpush1.bf16.msra.mxu0 0
        %715 = vmatprep.subr.bf16.mxu0 0
        %716 = vmatpush1.bf16.msra.mxu0 0
        %717 = vmatprep.subr.bf16.mxu0 0
        %718 = vmatpush1.bf16.msra.mxu0 0
        %719 = vmatprep.subr.bf16.mxu0 0
        %720 = vmatpush1.bf16.msra.mxu0 0
        %721 = vmatprep.subr.bf16.mxu0 0
        %722 = vmatpush1.bf16.msra.mxu0 0
        %723 = vmatprep.subr.bf16.mxu0 0
        %724 = vmatpush1.bf16.msra.mxu0 0
        %725 = vmatprep.subr.bf16.mxu0 0
        %726 = vmatpush1.bf16.msra.mxu0 0
        %727 = vmatprep.subr.bf16.mxu0 0
        %728 = vmatpush1.bf16.msra.mxu0 0
        %729 = vmatprep.subr.bf16.mxu0 0
        %730 = vmatpush1.bf16.msra.mxu0 0
        %731 = vmatprep.mubr.bf16.mxu0 0
        %732 = vmatmul.mubr.bf16.gmra.mrb[0].mxu0 %v604
        %v733 = vpop.f32.mrb[0].mxu0
        %v734 = vadd.f32 %v428, %v733
        %v735 = vpop.f32.mrb[0].mxu0
        %v736 = vpop.f32.mrb[0].mxu0
        %v737 = vadd.f32 %v428, %v736
        %v738 = vpop.f32.mrb[0].mxu0
        %739 = vmatprep.mubr.bf16.mxu0 0
        %740 = vmatmul.mubr.bf16.gmra.mrb[0].mxu0 %v607
        %v741 = vpop.f32.mrb[0].mxu0
        %v742 = vadd.f32 %v428, %v741
        %v743 = vpop.f32.mrb[0].mxu0
        %v744 = vpop.f32.mrb[0].mxu0
        %v745 = vadd.f32 %v428, %v744
        %v746 = vpop.f32.mrb[0].mxu0
        %747 = vmatprep.mubr.bf16.mxu0 0
        %748 = vmatmul.mubr.bf16.gmra.mrb[0].mxu0 %v610
        %v749 = vpop.f32.mrb[0].mxu0
        %v750 = vadd.f32 %v428, %v749
        %v751 = vpop.f32.mrb[0].mxu0
        %v752 = vpop.f32.mrb[0].mxu0
        %v753 = vadd.f32 %v428, %v752
        %v754 = vpop.f32.mrb[0].mxu0
        %755 = vmatprep.mubr.bf16.mxu0 0
        %756 = vmatmul.mubr.bf16.gmra.mrb[0].mxu0 %v613
        %v757 = vpop.f32.mrb[0].mxu0
        %v758 = vadd.f32 %v428, %v757
        %v759 = vpop.f32.mrb[0].mxu0
        %v760 = vpop.f32.mrb[0].mxu0
        %v761 = vadd.f32 %v428, %v760
        %v762 = vpop.f32.mrb[0].mxu0
        %763 = vmatprep.mubr.bf16.mxu0 0
        %764 = vmatmul.mubr.bf16.gmra.mrb[0].mxu0 %v616
        %v765 = vpop.f32.mrb[0].mxu0
        %v766 = vadd.f32 %v428, %v765
        %v767 = vpop.f32.mrb[0].mxu0
        %v768 = vpop.f32.mrb[0].mxu0
        %v769 = vadd.f32 %v428, %v768
        %v770 = vpop.f32.mrb[0].mxu0
        %771 = vmatprep.mubr.bf16.mxu0 0
        %772 = vmatmul.mubr.bf16.gmra.mrb[0].mxu0 %v619
        %v773 = vpop.f32.mrb[0].mxu0
        %v774 = vadd.f32 %v428, %v773
        %v775 = vpop.f32.mrb[0].mxu0
        %v776 = vpop.f32.mrb[0].mxu0
        %v777 = vadd.f32 %v428, %v776
        %v778 = vpop.f32.mrb[0].mxu0
        %779 = vmatprep.mubr.bf16.mxu0 0
        %780 = vmatmul.mubr.bf16.gmra.mrb[0].mxu0 %v622
        %v781 = vpop.f32.mrb[0].mxu0
        %v782 = vadd.f32 %v428, %v781
        %v783 = vpop.f32.mrb[0].mxu0
        %v784 = vpop.f32.mrb[0].mxu0
        %v785 = vadd.f32 %v428, %v784
        %v786 = vpop.f32.mrb[0].mxu0
        %787 = vmatprep.mubr.bf16.mxu0 0
        %788 = vmatmul.mubr.bf16.gmra.mrb[0].mxu0 %v625
        %v789 = vpop.f32.mrb[0].mxu0
        %v790 = vadd.f32 %v428, %v789
        %v791 = vpop.f32.mrb[0].mxu0
        %v792 = vpop.f32.mrb[0].mxu0
        %v793 = vadd.f32 %v428, %v792
        %v794 = vpop.f32.mrb[0].mxu0
        %795 = vmatprep.mubr.bf16.mxu0 0
        %796 = vmatmul.mubr.bf16.gmra.mrb[0].mxu0 %v628
        %v797 = vpop.f32.mrb[0].mxu0
        %v798 = vadd.f32 %v428, %v797
        %v799 = vpop.f32.mrb[0].mxu0
        %v800 = vpop.f32.mrb[0].mxu0
        %v801 = vadd.f32 %v428, %v800
        %v802 = vpop.f32.mrb[0].mxu0
        %803 = vmatprep.mubr.bf16.mxu0 0
        %804 = vmatmul.mubr.bf16.gmra.mrb[0].mxu0 %v631
        %v805 = vpop.f32.mrb[0].mxu0
        %v806 = vadd.f32 %v428, %v805
        %v807 = vpop.f32.mrb[0].mxu0
        %v808 = vpop.f32.mrb[0].mxu0
        %v809 = vadd.f32 %v428, %v808
        %v810 = vpop.f32.mrb[0].mxu0
        %811 = vmatprep.mubr.bf16.mxu0 0
        %812 = vmatmul.mubr.bf16.gmra.mrb[0].mxu0 %v634
        %v813 = vpop.f32.mrb[0].mxu0
        %v814 = vadd.f32 %v428, %v813
        %v815 = vpop.f32.mrb[0].mxu0
        %v816 = vpop.f32.mrb[0].mxu0
        %v817 = vadd.f32 %v428, %v816
        %v818 = vpop.f32.mrb[0].mxu0
        %819 = vmatprep.mubr.bf16.mxu0 0
        %820 = vmatmul.mubr.bf16.gmra.mrb[0].mxu0 %v637
        %v821 = vpop.f32.mrb[0].mxu0
        %v822 = vadd.f32 %v428, %v821
        %v823 = vpop.f32.mrb[0].mxu0
        %v824 = vpop.f32.mrb[0].mxu0
        %v825 = vadd.f32 %v428, %v824
        %v826 = vpop.f32.mrb[0].mxu0
        %827 = vmatprep.mubr.bf16.mxu0 0
        %828 = vmatmul.mubr.bf16.gmra.mrb[0].mxu0 %v640
        %v829 = vpop.f32.mrb[0].mxu0
        %v830 = vadd.f32 %v428, %v829
        %v831 = vpop.f32.mrb[0].mxu0
        %v832 = vpop.f32.mrb[0].mxu0
        %v833 = vadd.f32 %v428, %v832
        %v834 = vpop.f32.mrb[0].mxu0
        %835 = vmatprep.mubr.bf16.mxu0 0
        %836 = vmatmul.mubr.bf16.gmra.mrb[0].mxu0 %v643
        %v837 = vpop.f32.mrb[0].mxu0
        %v838 = vadd.f32 %v428, %v837
        %v839 = vpop.f32.mrb[0].mxu0
        %v840 = vpop.f32.mrb[0].mxu0
        %v841 = vadd.f32 %v428, %v840
        %v842 = vpop.f32.mrb[0].mxu0
        %843 = vmatprep.mubr.bf16.mxu0 0
        %844 = vmatmul.mubr.bf16.gmra.mrb[0].mxu0 %v646
        %v845 = vpop.f32.mrb[0].mxu0
        %v846 = vadd.f32 %v428, %v845
        %v847 = vpop.f32.mrb[0].mxu0
        %v848 = vpop.f32.mrb[0].mxu0
        %v849 = vadd.f32 %v428, %v848
        %v850 = vpop.f32.mrb[0].mxu0
        %851 = vmatprep.mubr.bf16.mxu0 0
        %852 = vmatmul.mubr.bf16.gmra.mrb[0].mxu0 %v649
        %v853 = vpop.f32.mrb[0].mxu0
        %v854 = vadd.f32 %v428, %v853
        %v855 = vpop.f32.mrb[0].mxu0
        %v856 = vpop.f32.mrb[0].mxu0
        %v857 = vadd.f32 %v428, %v856
        %v858 = vpop.f32.mrb[0].mxu0
        %859 = vmatprep.mubr.bf16.mxu0 0
        %860 = vmatmul.mubr.bf16.gmra.mrb[0].mxu0 %v652
        %v861 = vpop.f32.mrb[0].mxu0
        %v862 = vadd.f32 %v428, %v861
        %v863 = vpop.f32.mrb[0].mxu0
        %v864 = vpop.f32.mrb[0].mxu0
        %v865 = vadd.f32 %v428, %v864
        %v866 = vpop.f32.mrb[0].mxu0
        %867 = vmatprep.mubr.bf16.mxu0 0
        %868 = vmatmul.mubr.bf16.gmra.mrb[0].mxu0 %v655
        %v869 = vpop.f32.mrb[0].mxu0
        %v870 = vadd.f32 %v428, %v869
        %v871 = vpop.f32.mrb[0].mxu0
        %v872 = vpop.f32.mrb[0].mxu0
        %v873 = vadd.f32 %v428, %v872
        %v874 = vpop.f32.mrb[0].mxu0
        %875 = vmatprep.mubr.bf16.mxu0 0
        %876 = vmatmul.mubr.bf16.gmra.mrb[0].mxu0 %v658
        %v877 = vpop.f32.mrb[0].mxu0
        %v878 = vadd.f32 %v428, %v877
        %v879 = vpop.f32.mrb[0].mxu0
        %v880 = vpop.f32.mrb[0].mxu0
        %v881 = vadd.f32 %v428, %v880
        %v882 = vpop.f32.mrb[0].mxu0
        %883 = vmatprep.mubr.bf16.mxu0 0
        %884 = vmatmul.mubr.bf16.gmra.mrb[0].mxu0 %v661
        %v885 = vpop.f32.mrb[0].mxu0
        %v886 = vadd.f32 %v428, %v885
        %v887 = vpop.f32.mrb[0].mxu0
        %v888 = vpop.f32.mrb[0].mxu0
        %v889 = vadd.f32 %v428, %v888
        %v890 = vpop.f32.mrb[0].mxu0
        %891 = vmatprep.mubr.bf16.mxu0 0
        %892 = vmatmul.mubr.bf16.gmra.mrb[0].mxu0 %v664
        %v893 = vpop.f32.mrb[0].mxu0
        %v894 = vadd.f32 %v428, %v893
        %v895 = vpop.f32.mrb[0].mxu0
        %v896 = vpop.f32.mrb[0].mxu0
        %v897 = vadd.f32 %v428, %v896
        %v898 = vpop.f32.mrb[0].mxu0
        %899 = vmatprep.mubr.bf16.mxu0 0
        %900 = vmatmul.mubr.bf16.gmra.mrb[0].mxu0 %v667
        %v901 = vpop.f32.mrb[0].mxu0
        %v902 = vadd.f32 %v428, %v901
        %v903 = vpop.f32.mrb[0].mxu0
        %v904 = vpop.f32.mrb[0].mxu0
        %v905 = vadd.f32 %v428, %v904
        %v906 = vpop.f32.mrb[0].mxu0
        %907 = vmatprep.mubr.bf16.mxu0 0
        %908 = vmatmul.mubr.bf16.gmra.mrb[0].mxu0 %v670
        %v909 = vpop.f32.mrb[0].mxu0
        %v910 = vadd.f32 %v428, %v909
        %v911 = vpop.f32.mrb[0].mxu0
        %v912 = vpop.f32.mrb[0].mxu0
        %v913 = vadd.f32 %v428, %v912
        %v914 = vpop.f32.mrb[0].mxu0
        %915 = vmatprep.mubr.bf16.mxu0 0
        %916 = vmatmul.mubr.bf16.gmra.mrb[0].mxu0 %v673
        %v917 = vpop.f32.mrb[0].mxu0
        %v918 = vadd.f32 %v428, %v917
        %v919 = vpop.f32.mrb[0].mxu0
        %v920 = vpop.f32.mrb[0].mxu0
        %v921 = vadd.f32 %v428, %v920
        %v922 = vpop.f32.mrb[0].mxu0
        %923 = vmatprep.mubr.bf16.mxu0 0
        %924 = vmatmul.mubr.bf16.gmra.mrb[0].mxu0 %v676
        %v925 = vpop.f32.mrb[0].mxu0
        %v926 = vadd.f32 %v428, %v925
        %v927 = vpop.f32.mrb[0].mxu0
        %v928 = vpop.f32.mrb[0].mxu0
        %v929 = vadd.f32 %v428, %v928
        %v930 = vpop.f32.mrb[0].mxu0
        %931 = vmatprep.mubr.bf16.mxu0 0
        %932 = vmatmul.mubr.bf16.gmra.mrb[0].mxu0 %v679
        %v933 = vpop.f32.mrb[0].mxu0
        %v934 = vadd.f32 %v428, %v933
        %v935 = vpop.f32.mrb[0].mxu0
        %v936 = vpop.f32.mrb[0].mxu0
        %v937 = vadd.f32 %v428, %v936
        %v938 = vpop.f32.mrb[0].mxu0
        %939 = vmatprep.mubr.bf16.mxu0 0
        %940 = vmatmul.mubr.bf16.gmra.mrb[0].mxu0 %v682
        %v941 = vpop.f32.mrb[0].mxu0
        %v942 = vadd.f32 %v428, %v941
        %v943 = vpop.f32.mrb[0].mxu0
        %v944 = vpop.f32.mrb[0].mxu0
        %v945 = vadd.f32 %v428, %v944
        %v946 = vpop.f32.mrb[0].mxu0
        %947 = vmatprep.mubr.bf16.mxu0 0
        %948 = vmatmul.mubr.bf16.gmra.mrb[0].mxu0 %v685
        %v949 = vpop.f32.mrb[0].mxu0
        %v950 = vadd.f32 %v428, %v949
        %v951 = vpop.f32.mrb[0].mxu0
        %v952 = vpop.f32.mrb[0].mxu0
        %v953 = vadd.f32 %v428, %v952
        %v954 = vpop.f32.mrb[0].mxu0
        %955 = vmatprep.mubr.bf16.mxu0 0
        %956 = vmatmul.mubr.bf16.gmra.mrb[0].mxu0 %v688
        %v957 = vpop.f32.mrb[0].mxu0
        %v958 = vadd.f32 %v428, %v957
        %v959 = vpop.f32.mrb[0].mxu0
        %v960 = vpop.f32.mrb[0].mxu0
        %v961 = vadd.f32 %v428, %v960
        %v962 = vpop.f32.mrb[0].mxu0
        %963 = vmatprep.mubr.bf16.mxu0 0
        %964 = vmatmul.mubr.bf16.gmra.mrb[0].mxu0 %v691
        %v965 = vpop.f32.mrb[0].mxu0
        %v966 = vadd.f32 %v428, %v965
        %v967 = vpop.f32.mrb[0].mxu0
        %v968 = vpop.f32.mrb[0].mxu0
        %v969 = vadd.f32 %v428, %v968
        %v970 = vpop.f32.mrb[0].mxu0
        %971 = vmatprep.mubr.bf16.mxu0 0
        %972 = vmatmul.mubr.bf16.gmra.mrb[0].mxu0 %v694
        %v973 = vpop.f32.mrb[0].mxu0
        %v974 = vadd.f32 %v428, %v973
        %v975 = vpop.f32.mrb[0].mxu0
        %v976 = vpop.f32.mrb[0].mxu0
        %v977 = vadd.f32 %v428, %v976
        %v978 = vpop.f32.mrb[0].mxu0
        %979 = vmatprep.mubr.bf16.mxu0 0
        %980 = vmatmul.mubr.bf16.gmra.mrb[0].mxu0 %v697
        %v981 = vpop.f32.mrb[0].mxu0
        %v982 = vadd.f32 %v428, %v981
        %v983 = vpop.f32.mrb[0].mxu0
        %v984 = vpop.f32.mrb[0].mxu0
        %v985 = vadd.f32 %v428, %v984
        %v986 = vpop.f32.mrb[0].mxu0
        %987 = vdwg.mxu0
        %v988 = vmax.f32 %v734, 0.0
        %v989 = vmax.f32 %v737, 0.0
        %v990 = vmax.f32 %v742, 0.0
        %v991 = vmax.f32 %v745, 0.0
        %v992 = vmax.f32 %v750, 0.0
        %v993 = vmax.f32 %v753, 0.0
        %v994 = vmax.f32 %v758, 0.0
        %v995 = vmax.f32 %v761, 0.0
        %v996 = vmax.f32 %v766, 0.0
        %v997 = vmax.f32 %v769, 0.0
        %v998 = vmax.f32 %v774, 0.0
        %v999 = vmax.f32 %v777, 0.0
        %v1000 = vmax.f32 %v782, 0.0
        %v1001 = vmax.f32 %v785, 0.0
        %v1002 = vmax.f32 %v790, 0.0
        %v1003 = vmax.f32 %v793, 0.0
        %v1004 = vmax.f32 %v798, 0.0
        %v1005 = vmax.f32 %v801, 0.0
        %v1006 = vmax.f32 %v806, 0.0
        %v1007 = vmax.f32 %v809, 0.0
        %v1008 = vmax.f32 %v814, 0.0
        %v1009 = vmax.f32 %v817, 0.0
        %v1010 = vmax.f32 %v822, 0.0
        %v1011 = vmax.f32 %v825, 0.0
        %v1012 = vmax.f32 %v830, 0.0
        %v1013 = vmax.f32 %v833, 0.0
        %v1014 = vmax.f32 %v838, 0.0
        %v1015 = vmax.f32 %v841, 0.0
        %v1016 = vmax.f32 %v846, 0.0
        %v1017 = vmax.f32 %v849, 0.0
        %v1018 = vmax.f32 %v854, 0.0
        %v1019 = vmax.f32 %v857, 0.0
        %v1020 = vmax.f32 %v862, 0.0
        %v1021 = vmax.f32 %v865, 0.0
        %v1022 = vmax.f32 %v870, 0.0
        %v1023 = vmax.f32 %v873, 0.0
        %v1024 = vmax.f32 %v878, 0.0
        %v1025 = vmax.f32 %v881, 0.0
        %v1026 = vmax.f32 %v886, 0.0
        %v1027 = vmax.f32 %v889, 0.0
        %v1028 = vmax.f32 %v894, 0.0
        %v1029 = vmax.f32 %v897, 0.0
        %v1030 = vmax.f32 %v902, 0.0
        %v1031 = vmax.f32 %v905, 0.0
        %v1032 = vmax.f32 %v910, 0.0
        %v1033 = vmax.f32 %v913, 0.0
        %v1034 = vmax.f32 %v918, 0.0
        %v1035 = vmax.f32 %v921, 0.0
        %v1036 = vmax.f32 %v926, 0.0
        %v1037 = vmax.f32 %v929, 0.0
        %v1038 = vmax.f32 %v934, 0.0
        %v1039 = vmax.f32 %v937, 0.0
        %v1040 = vmax.f32 %v942, 0.0
        %v1041 = vmax.f32 %v945, 0.0
        %v1042 = vmax.f32 %v950, 0.0
        %v1043 = vmax.f32 %v953, 0.0
        %v1044 = vmax.f32 %v958, 0.0
        %v1045 = vmax.f32 %v961, 0.0
        %v1046 = vmax.f32 %v966, 0.0
        %v1047 = vmax.f32 %v969, 0.0
        %v1048 = vmax.f32 %v974, 0.0
        %v1049 = vmax.f32 %v977, 0.0
        %v1050 = vmax.f32 %v982, 0.0
        %v1051 = vmax.f32 %v985, 0.0
        %v1052 = vpack.c.bf16 %v989, %v988
        %v1053 = vpack.c.bf16 %v991, %v990
        %v1054 = vpack.c.bf16 %v993, %v992
        %v1055 = vpack.c.bf16 %v995, %v994
        %v1056 = vpack.c.bf16 %v997, %v996
        %v1057 = vpack.c.bf16 %v999, %v998
        %v1058 = vpack.c.bf16 %v1001, %v1000
        %v1059 = vpack.c.bf16 %v1003, %v1002
        %v1060 = vpack.c.bf16 %v1005, %v1004
        %v1061 = vpack.c.bf16 %v1007, %v1006
        %v1062 = vpack.c.bf16 %v1009, %v1008
        %v1063 = vpack.c.bf16 %v1011, %v1010
        %v1064 = vpack.c.bf16 %v1013, %v1012
        %v1065 = vpack.c.bf16 %v1015, %v1014
        %v1066 = vpack.c.bf16 %v1017, %v1016
        %v1067 = vpack.c.bf16 %v1019, %v1018
        %v1068 = vpack.c.bf16 %v1021, %v1020
        %v1069 = vpack.c.bf16 %v1023, %v1022
        %v1070 = vpack.c.bf16 %v1025, %v1024
        %v1071 = vpack.c.bf16 %v1027, %v1026
        %v1072 = vpack.c.bf16 %v1029, %v1028
        %v1073 = vpack.c.bf16 %v1031, %v1030
        %v1074 = vpack.c.bf16 %v1033, %v1032
        %v1075 = vpack.c.bf16 %v1035, %v1034
        %v1076 = vpack.c.bf16 %v1037, %v1036
        %v1077 = vpack.c.bf16 %v1039, %v1038
        %v1078 = vpack.c.bf16 %v1041, %v1040
        %v1079 = vpack.c.bf16 %v1043, %v1042
        %v1080 = vpack.c.bf16 %v1045, %v1044
        %v1081 = vpack.c.bf16 %v1047, %v1046
        %v1082 = vpack.c.bf16 %v1049, %v1048
        %v1083 = vpack.c.bf16 %v1051, %v1050
        %v1084 = vld [vmem:[%s3] sm:$0xf]
        %v1085 = vld [vmem:[%s3 + $0x4] sm:$0xf]
        %v1086 = vld [vmem:[%s3 + $0x8] sm:$0xf]
        %v1087 = vld [vmem:[%s3 + $0xc] sm:$0xf]
        %v1088 = vld [vmem:[%s3 + $0x10] sm:$0xf]
        %v1089 = vld [vmem:[%s3 + $0x14] sm:$0xf]
        %v1090 = vld [vmem:[%s3 + $0x18] sm:$0xf]
        %v1091 = vld [vmem:[%s3 + $0x1c] sm:$0xf]
        %v1092 = vld [vmem:[%s3 + $0x20] sm:$0xf]
        %v1093 = vld [vmem:[%s3 + $0x24] sm:$0xf]
        %v1094 = vld [vmem:[%s3 + $0x28] sm:$0xf]
        %v1095 = vld [vmem:[%s3 + $0x2c] sm:$0xf]
        %v1096 = vld [vmem:[%s3 + $0x30] sm:$0xf]
        %v1097 = vld [vmem:[%s3 + $0x34] sm:$0xf]
        %v1098 = vld [vmem:[%s3 + $0x38] sm:$0xf]
        %v1099 = vld [vmem:[%s3 + $0x3c] sm:$0xf]
        %v1100 = vld [vmem:[%s4] sm:$0x1]
        %v1102 = vlaneseq
        %v1103 = vshrl.u32 %v1102, 7
        %v1104 = vsub.s32 0, %v1103
        %v1105 = vrot.slane %v1100, %v1104
        %v1123 = vunpack.c.l.b16 %v1084
        %v1124 = vunpack.c.l.b16 %v1085
        %v1125 = vunpack.c.l.b16 %v1086
        %v1126 = vunpack.c.l.b16 %v1087
        %v1127 = vunpack.c.l.b16 %v1088
        %v1128 = vunpack.c.l.b16 %v1089
        %v1129 = vunpack.c.l.b16 %v1090
        %v1130 = vunpack.c.l.b16 %v1091
        %v1131 = vunpack.c.l.b16 %v1092
        %v1132 = vunpack.c.l.b16 %v1093
        %v1133 = vunpack.c.l.b16 %v1094
        %v1134 = vunpack.c.l.b16 %v1095
        %v1135 = vunpack.c.l.b16 %v1096
        %v1136 = vunpack.c.l.b16 %v1097
        %v1137 = vunpack.c.l.b16 %v1098
        %v1138 = vunpack.c.l.b16 %v1099
        %v1139 = vpack.c.b16 %v1124, %v1123
        %v1140 = vpack.c.b16 %v1126, %v1125
        %v1141 = vpack.c.b16 %v1128, %v1127
        %v1142 = vpack.c.b16 %v1130, %v1129
        %v1143 = vpack.c.b16 %v1132, %v1131
        %v1144 = vpack.c.b16 %v1134, %v1133
        %v1145 = vpack.c.b16 %v1136, %v1135
        %v1146 = vpack.c.b16 %v1138, %v1137
        %1155 = vmatprep.subr.bf16.mxu0 0
        %1156 = vmatpush1.bf16.msra.mxu0 %v1139
        %1157 = vmatprep.subr.bf16.mxu0 0
        %1158 = vmatpush1.bf16.msra.mxu0 %v1140
        %1159 = vmatprep.subr.bf16.mxu0 0
        %1160 = vmatpush1.bf16.msra.mxu0 %v1141
        %1161 = vmatprep.subr.bf16.mxu0 0
        %1162 = vmatpush1.bf16.msra.mxu0 %v1142
        %1163 = vmatprep.subr.bf16.mxu0 0
        %1164 = vmatpush1.bf16.msra.mxu0 %v1143
        %1165 = vmatprep.subr.bf16.mxu0 0
        %1166 = vmatpush1.bf16.msra.mxu0 %v1144
        %1167 = vmatprep.subr.bf16.mxu0 0
        %1168 = vmatpush1.bf16.msra.mxu0 %v1145
        %1169 = vmatprep.subr.bf16.mxu0 0
        %1170 = vmatpush1.bf16.msra.mxu0 %v1146
        %1171 = vmatprep.subr.bf16.mxu0 0
        %1172 = vmatpush1.bf16.msra.mxu0 0
        %1173 = vmatprep.subr.bf16.mxu0 0
        %1174 = vmatpush1.bf16.msra.mxu0 0
        %1175 = vmatprep.subr.bf16.mxu0 0
        %1176 = vmatpush1.bf16.msra.mxu0 0
        %1177 = vmatprep.subr.bf16.mxu0 0
        %1178 = vmatpush1.bf16.msra.mxu0 0
        %1179 = vmatprep.subr.bf16.mxu0 0
        %1180 = vmatpush1.bf16.msra.mxu0 0
        %1181 = vmatprep.subr.bf16.mxu0 0
        %1182 = vmatpush1.bf16.msra.mxu0 0
        %1183 = vmatprep.subr.bf16.mxu0 0
        %1184 = vmatpush1.bf16.msra.mxu0 0
        %1185 = vmatprep.subr.bf16.mxu0 0
        %1186 = vmatpush1.bf16.msra.mxu0 0
        %1187 = vmatprep.mubr.bf16.mxu0 0
        %1188 = vmatmul.mubr.bf16.gmra.mrb[0].mxu0 %v1052
        %v1189 = vpop.f32.mrb[0].mxu0
        %v1190 = vadd.f32 %v1105, %v1189
        %v1191 = vpop.f32.mrb[0].mxu0
        %v1192 = vpop.f32.mrb[0].mxu0
        %v1193 = vadd.f32 %v1105, %v1192
        %v1194 = vpop.f32.mrb[0].mxu0
        %1195 = vmatprep.mubr.bf16.mxu0 0
        %1196 = vmatmul.mubr.bf16.gmra.mrb[0].mxu0 %v1053
        %v1197 = vpop.f32.mrb[0].mxu0
        %v1198 = vadd.f32 %v1105, %v1197
        %v1199 = vpop.f32.mrb[0].mxu0
        %v1200 = vpop.f32.mrb[0].mxu0
        %v1201 = vadd.f32 %v1105, %v1200
        %v1202 = vpop.f32.mrb[0].mxu0
        %1203 = vmatprep.mubr.bf16.mxu0 0
        %1204 = vmatmul.mubr.bf16.gmra.mrb[0].mxu0 %v1054
        %v1205 = vpop.f32.mrb[0].mxu0
        %v1206 = vadd.f32 %v1105, %v1205
        %v1207 = vpop.f32.mrb[0].mxu0
        %v1208 = vpop.f32.mrb[0].mxu0
        %v1209 = vadd.f32 %v1105, %v1208
        %v1210 = vpop.f32.mrb[0].mxu0
        %1211 = vmatprep.mubr.bf16.mxu0 0
        %1212 = vmatmul.mubr.bf16.gmra.mrb[0].mxu0 %v1055
        %v1213 = vpop.f32.mrb[0].mxu0
        %v1214 = vadd.f32 %v1105, %v1213
        %v1215 = vpop.f32.mrb[0].mxu0
        %v1216 = vpop.f32.mrb[0].mxu0
        %v1217 = vadd.f32 %v1105, %v1216
        %v1218 = vpop.f32.mrb[0].mxu0
        %1219 = vmatprep.mubr.bf16.mxu0 0
        %1220 = vmatmul.mubr.bf16.gmra.mrb[0].mxu0 %v1056
        %v1221 = vpop.f32.mrb[0].mxu0
        %v1222 = vadd.f32 %v1105, %v1221
        %v1223 = vpop.f32.mrb[0].mxu0
        %v1224 = vpop.f32.mrb[0].mxu0
        %v1225 = vadd.f32 %v1105, %v1224
        %v1226 = vpop.f32.mrb[0].mxu0
        %1227 = vmatprep.mubr.bf16.mxu0 0
        %1228 = vmatmul.mubr.bf16.gmra.mrb[0].mxu0 %v1057
        %v1229 = vpop.f32.mrb[0].mxu0
        %v1230 = vadd.f32 %v1105, %v1229
        %v1231 = vpop.f32.mrb[0].mxu0
        %v1232 = vpop.f32.mrb[0].mxu0
        %v1233 = vadd.f32 %v1105, %v1232
        %v1234 = vpop.f32.mrb[0].mxu0
        %1235 = vmatprep.mubr.bf16.mxu0 0
        %1236 = vmatmul.mubr.bf16.gmra.mrb[0].mxu0 %v1058
        %v1237 = vpop.f32.mrb[0].mxu0
        %v1238 = vadd.f32 %v1105, %v1237
        %v1239 = vpop.f32.mrb[0].mxu0
        %v1240 = vpop.f32.mrb[0].mxu0
        %v1241 = vadd.f32 %v1105, %v1240
        %v1242 = vpop.f32.mrb[0].mxu0
        %1243 = vmatprep.mubr.bf16.mxu0 0
        %1244 = vmatmul.mubr.bf16.gmra.mrb[0].mxu0 %v1059
        %v1245 = vpop.f32.mrb[0].mxu0
        %v1246 = vadd.f32 %v1105, %v1245
        %v1247 = vpop.f32.mrb[0].mxu0
        %v1248 = vpop.f32.mrb[0].mxu0
        %v1249 = vadd.f32 %v1105, %v1248
        %v1250 = vpop.f32.mrb[0].mxu0
        %1251 = vmatprep.mubr.bf16.mxu0 0
        %1252 = vmatmul.mubr.bf16.gmra.mrb[0].mxu0 %v1060
        %v1253 = vpop.f32.mrb[0].mxu0
        %v1254 = vadd.f32 %v1105, %v1253
        %v1255 = vpop.f32.mrb[0].mxu0
        %v1256 = vpop.f32.mrb[0].mxu0
        %v1257 = vadd.f32 %v1105, %v1256
        %v1258 = vpop.f32.mrb[0].mxu0
        %1259 = vmatprep.mubr.bf16.mxu0 0
        %1260 = vmatmul.mubr.bf16.gmra.mrb[0].mxu0 %v1061
        %v1261 = vpop.f32.mrb[0].mxu0
        %v1262 = vadd.f32 %v1105, %v1261
        %v1263 = vpop.f32.mrb[0].mxu0
        %v1264 = vpop.f32.mrb[0].mxu0
        %v1265 = vadd.f32 %v1105, %v1264
        %v1266 = vpop.f32.mrb[0].mxu0
        %1267 = vmatprep.mubr.bf16.mxu0 0
        %1268 = vmatmul.mubr.bf16.gmra.mrb[0].mxu0 %v1062
        %v1269 = vpop.f32.mrb[0].mxu0
        %v1270 = vadd.f32 %v1105, %v1269
        %v1271 = vpop.f32.mrb[0].mxu0
        %v1272 = vpop.f32.mrb[0].mxu0
        %v1273 = vadd.f32 %v1105, %v1272
        %v1274 = vpop.f32.mrb[0].mxu0
        %1275 = vmatprep.mubr.bf16.mxu0 0
        %1276 = vmatmul.mubr.bf16.gmra.mrb[0].mxu0 %v1063
        %v1277 = vpop.f32.mrb[0].mxu0
        %v1278 = vadd.f32 %v1105, %v1277
        %v1279 = vpop.f32.mrb[0].mxu0
        %v1280 = vpop.f32.mrb[0].mxu0
        %v1281 = vadd.f32 %v1105, %v1280
        %v1282 = vpop.f32.mrb[0].mxu0
        %1283 = vmatprep.mubr.bf16.mxu0 0
        %1284 = vmatmul.mubr.bf16.gmra.mrb[0].mxu0 %v1064
        %v1285 = vpop.f32.mrb[0].mxu0
        %v1286 = vadd.f32 %v1105, %v1285
        %v1287 = vpop.f32.mrb[0].mxu0
        %v1288 = vpop.f32.mrb[0].mxu0
        %v1289 = vadd.f32 %v1105, %v1288
        %v1290 = vpop.f32.mrb[0].mxu0
        %1291 = vmatprep.mubr.bf16.mxu0 0
        %1292 = vmatmul.mubr.bf16.gmra.mrb[0].mxu0 %v1065
        %v1293 = vpop.f32.mrb[0].mxu0
        %v1294 = vadd.f32 %v1105, %v1293
        %v1295 = vpop.f32.mrb[0].mxu0
        %v1296 = vpop.f32.mrb[0].mxu0
        %v1297 = vadd.f32 %v1105, %v1296
        %v1298 = vpop.f32.mrb[0].mxu0
        %1299 = vmatprep.mubr.bf16.mxu0 0
        %1300 = vmatmul.mubr.bf16.gmra.mrb[0].mxu0 %v1066
        %v1301 = vpop.f32.mrb[0].mxu0
        %v1302 = vadd.f32 %v1105, %v1301
        %v1303 = vpop.f32.mrb[0].mxu0
        %v1304 = vpop.f32.mrb[0].mxu0
        %v1305 = vadd.f32 %v1105, %v1304
        %v1306 = vpop.f32.mrb[0].mxu0
        %1307 = vmatprep.mubr.bf16.mxu0 0
        %1308 = vmatmul.mubr.bf16.gmra.mrb[0].mxu0 %v1067
        %v1309 = vpop.f32.mrb[0].mxu0
        %v1310 = vadd.f32 %v1105, %v1309
        %v1311 = vpop.f32.mrb[0].mxu0
        %v1312 = vpop.f32.mrb[0].mxu0
        %v1313 = vadd.f32 %v1105, %v1312
        %v1314 = vpop.f32.mrb[0].mxu0
        %1315 = vmatprep.mubr.bf16.mxu0 0
        %1316 = vmatmul.mubr.bf16.gmra.mrb[0].mxu0 %v1068
        %v1317 = vpop.f32.mrb[0].mxu0
        %v1318 = vadd.f32 %v1105, %v1317
        %v1319 = vpop.f32.mrb[0].mxu0
        %v1320 = vpop.f32.mrb[0].mxu0
        %v1321 = vadd.f32 %v1105, %v1320
        %v1322 = vpop.f32.mrb[0].mxu0
        %1323 = vmatprep.mubr.bf16.mxu0 0
        %1324 = vmatmul.mubr.bf16.gmra.mrb[0].mxu0 %v1069
        %v1325 = vpop.f32.mrb[0].mxu0
        %v1326 = vadd.f32 %v1105, %v1325
        %v1327 = vpop.f32.mrb[0].mxu0
        %v1328 = vpop.f32.mrb[0].mxu0
        %v1329 = vadd.f32 %v1105, %v1328
        %v1330 = vpop.f32.mrb[0].mxu0
        %1331 = vmatprep.mubr.bf16.mxu0 0
        %1332 = vmatmul.mubr.bf16.gmra.mrb[0].mxu0 %v1070
        %v1333 = vpop.f32.mrb[0].mxu0
        %v1334 = vadd.f32 %v1105, %v1333
        %v1335 = vpop.f32.mrb[0].mxu0
        %v1336 = vpop.f32.mrb[0].mxu0
        %v1337 = vadd.f32 %v1105, %v1336
        %v1338 = vpop.f32.mrb[0].mxu0
        %1339 = vmatprep.mubr.bf16.mxu0 0
        %1340 = vmatmul.mubr.bf16.gmra.mrb[0].mxu0 %v1071
        %v1341 = vpop.f32.mrb[0].mxu0
        %v1342 = vadd.f32 %v1105, %v1341
        %v1343 = vpop.f32.mrb[0].mxu0
        %v1344 = vpop.f32.mrb[0].mxu0
        %v1345 = vadd.f32 %v1105, %v1344
        %v1346 = vpop.f32.mrb[0].mxu0
        %1347 = vmatprep.mubr.bf16.mxu0 0
        %1348 = vmatmul.mubr.bf16.gmra.mrb[0].mxu0 %v1072
        %v1349 = vpop.f32.mrb[0].mxu0
        %v1350 = vadd.f32 %v1105, %v1349
        %v1351 = vpop.f32.mrb[0].mxu0
        %v1352 = vpop.f32.mrb[0].mxu0
        %v1353 = vadd.f32 %v1105, %v1352
        %v1354 = vpop.f32.mrb[0].mxu0
        %1355 = vmatprep.mubr.bf16.mxu0 0
        %1356 = vmatmul.mubr.bf16.gmra.mrb[0].mxu0 %v1073
        %v1357 = vpop.f32.mrb[0].mxu0
        %v1358 = vadd.f32 %v1105, %v1357
        %v1359 = vpop.f32.mrb[0].mxu0
        %v1360 = vpop.f32.mrb[0].mxu0
        %v1361 = vadd.f32 %v1105, %v1360
        %v1362 = vpop.f32.mrb[0].mxu0
        %1363 = vmatprep.mubr.bf16.mxu0 0
        %1364 = vmatmul.mubr.bf16.gmra.mrb[0].mxu0 %v1074
        %v1365 = vpop.f32.mrb[0].mxu0
        %v1366 = vadd.f32 %v1105, %v1365
        %v1367 = vpop.f32.mrb[0].mxu0
        %v1368 = vpop.f32.mrb[0].mxu0
        %v1369 = vadd.f32 %v1105, %v1368
        %v1370 = vpop.f32.mrb[0].mxu0
        %1371 = vmatprep.mubr.bf16.mxu0 0
        %1372 = vmatmul.mubr.bf16.gmra.mrb[0].mxu0 %v1075
        %v1373 = vpop.f32.mrb[0].mxu0
        %v1374 = vadd.f32 %v1105, %v1373
        %v1375 = vpop.f32.mrb[0].mxu0
        %v1376 = vpop.f32.mrb[0].mxu0
        %v1377 = vadd.f32 %v1105, %v1376
        %v1378 = vpop.f32.mrb[0].mxu0
        %1379 = vmatprep.mubr.bf16.mxu0 0
        %1380 = vmatmul.mubr.bf16.gmra.mrb[0].mxu0 %v1076
        %v1381 = vpop.f32.mrb[0].mxu0
        %v1382 = vadd.f32 %v1105, %v1381
        %v1383 = vpop.f32.mrb[0].mxu0
        %v1384 = vpop.f32.mrb[0].mxu0
        %v1385 = vadd.f32 %v1105, %v1384
        %v1386 = vpop.f32.mrb[0].mxu0
        %1387 = vmatprep.mubr.bf16.mxu0 0
        %1388 = vmatmul.mubr.bf16.gmra.mrb[0].mxu0 %v1077
        %v1389 = vpop.f32.mrb[0].mxu0
        %v1390 = vadd.f32 %v1105, %v1389
        %v1391 = vpop.f32.mrb[0].mxu0
        %v1392 = vpop.f32.mrb[0].mxu0
        %v1393 = vadd.f32 %v1105, %v1392
        %v1394 = vpop.f32.mrb[0].mxu0
        %1395 = vmatprep.mubr.bf16.mxu0 0
        %1396 = vmatmul.mubr.bf16.gmra.mrb[0].mxu0 %v1078
        %v1397 = vpop.f32.mrb[0].mxu0
        %v1398 = vadd.f32 %v1105, %v1397
        %v1399 = vpop.f32.mrb[0].mxu0
        %v1400 = vpop.f32.mrb[0].mxu0
        %v1401 = vadd.f32 %v1105, %v1400
        %v1402 = vpop.f32.mrb[0].mxu0
        %1403 = vmatprep.mubr.bf16.mxu0 0
        %1404 = vmatmul.mubr.bf16.gmra.mrb[0].mxu0 %v1079
        %v1405 = vpop.f32.mrb[0].mxu0
        %v1406 = vadd.f32 %v1105, %v1405
        %v1407 = vpop.f32.mrb[0].mxu0
        %v1408 = vpop.f32.mrb[0].mxu0
        %v1409 = vadd.f32 %v1105, %v1408
        %v1410 = vpop.f32.mrb[0].mxu0
        %1411 = vmatprep.mubr.bf16.mxu0 0
        %1412 = vmatmul.mubr.bf16.gmra.mrb[0].mxu0 %v1080
        %v1413 = vpop.f32.mrb[0].mxu0
        %v1414 = vadd.f32 %v1105, %v1413
        %v1415 = vpop.f32.mrb[0].mxu0
        %v1416 = vpop.f32.mrb[0].mxu0
        %v1417 = vadd.f32 %v1105, %v1416
        %v1418 = vpop.f32.mrb[0].mxu0
        %1419 = vmatprep.mubr.bf16.mxu0 0
        %1420 = vmatmul.mubr.bf16.gmra.mrb[0].mxu0 %v1081
        %v1421 = vpop.f32.mrb[0].mxu0
        %v1422 = vadd.f32 %v1105, %v1421
        %v1423 = vpop.f32.mrb[0].mxu0
        %v1424 = vpop.f32.mrb[0].mxu0
        %v1425 = vadd.f32 %v1105, %v1424
        %v1426 = vpop.f32.mrb[0].mxu0
        %1427 = vmatprep.mubr.bf16.mxu0 0
        %1428 = vmatmul.mubr.bf16.gmra.mrb[0].mxu0 %v1082
        %v1429 = vpop.f32.mrb[0].mxu0
        %v1430 = vadd.f32 %v1105, %v1429
        %v1431 = vpop.f32.mrb[0].mxu0
        %v1432 = vpop.f32.mrb[0].mxu0
        %v1433 = vadd.f32 %v1105, %v1432
        %v1434 = vpop.f32.mrb[0].mxu0
        %1435 = vmatprep.mubr.bf16.mxu0 0
        %1436 = vmatmul.mubr.bf16.gmra.mrb[0].mxu0 %v1083
        %v1437 = vpop.f32.mrb[0].mxu0
        %v1438 = vadd.f32 %v1105, %v1437
        %v1439 = vpop.f32.mrb[0].mxu0
        %v1440 = vpop.f32.mrb[0].mxu0
        %v1441 = vadd.f32 %v1105, %v1440
        %v1442 = vpop.f32.mrb[0].mxu0
        %1443 = vdwg.mxu0
        %v1444 = vmax.f32 %v1190, 0.0
        %v1445 = vmax.f32 %v1193, 0.0
        %v1446 = vmax.f32 %v1198, 0.0
        %v1447 = vmax.f32 %v1201, 0.0
        %v1448 = vmax.f32 %v1206, 0.0
        %v1449 = vmax.f32 %v1209, 0.0
        %v1450 = vmax.f32 %v1214, 0.0
        %v1451 = vmax.f32 %v1217, 0.0
        %v1452 = vmax.f32 %v1222, 0.0
        %v1453 = vmax.f32 %v1225, 0.0
        %v1454 = vmax.f32 %v1230, 0.0
        %v1455 = vmax.f32 %v1233, 0.0
        %v1456 = vmax.f32 %v1238, 0.0
        %v1457 = vmax.f32 %v1241, 0.0
        %v1458 = vmax.f32 %v1246, 0.0
        %v1459 = vmax.f32 %v1249, 0.0
        %v1460 = vmax.f32 %v1254, 0.0
        %v1461 = vmax.f32 %v1257, 0.0
        %v1462 = vmax.f32 %v1262, 0.0
        %v1463 = vmax.f32 %v1265, 0.0
        %v1464 = vmax.f32 %v1270, 0.0
        %v1465 = vmax.f32 %v1273, 0.0
        %v1466 = vmax.f32 %v1278, 0.0
        %v1467 = vmax.f32 %v1281, 0.0
        %v1468 = vmax.f32 %v1286, 0.0
        %v1469 = vmax.f32 %v1289, 0.0
        %v1470 = vmax.f32 %v1294, 0.0
        %v1471 = vmax.f32 %v1297, 0.0
        %v1472 = vmax.f32 %v1302, 0.0
        %v1473 = vmax.f32 %v1305, 0.0
        %v1474 = vmax.f32 %v1310, 0.0
        %v1475 = vmax.f32 %v1313, 0.0
        %v1476 = vmax.f32 %v1318, 0.0
        %v1477 = vmax.f32 %v1321, 0.0
        %v1478 = vmax.f32 %v1326, 0.0
        %v1479 = vmax.f32 %v1329, 0.0
        %v1480 = vmax.f32 %v1334, 0.0
        %v1481 = vmax.f32 %v1337, 0.0
        %v1482 = vmax.f32 %v1342, 0.0
        %v1483 = vmax.f32 %v1345, 0.0
        %v1484 = vmax.f32 %v1350, 0.0
        %v1485 = vmax.f32 %v1353, 0.0
        %v1486 = vmax.f32 %v1358, 0.0
        %v1487 = vmax.f32 %v1361, 0.0
        %v1488 = vmax.f32 %v1366, 0.0
        %v1489 = vmax.f32 %v1369, 0.0
        %v1490 = vmax.f32 %v1374, 0.0
        %v1491 = vmax.f32 %v1377, 0.0
        %v1492 = vmax.f32 %v1382, 0.0
        %v1493 = vmax.f32 %v1385, 0.0
        %v1494 = vmax.f32 %v1390, 0.0
        %v1495 = vmax.f32 %v1393, 0.0
        %v1496 = vmax.f32 %v1398, 0.0
        %v1497 = vmax.f32 %v1401, 0.0
        %v1498 = vmax.f32 %v1406, 0.0
        %v1499 = vmax.f32 %v1409, 0.0
        %v1500 = vmax.f32 %v1414, 0.0
        %v1501 = vmax.f32 %v1417, 0.0
        %v1502 = vmax.f32 %v1422, 0.0
        %v1503 = vmax.f32 %v1425, 0.0
        %v1504 = vmax.f32 %v1430, 0.0
        %v1505 = vmax.f32 %v1433, 0.0
        %v1506 = vmax.f32 %v1438, 0.0
        %v1507 = vmax.f32 %v1441, 0.0
        %v1508 = vpack.c.bf16 %v1445, %v1444
        %v1509 = vpack.c.bf16 %v1447, %v1446
        %v1510 = vpack.c.bf16 %v1449, %v1448
        %v1511 = vpack.c.bf16 %v1451, %v1450
        %v1512 = vpack.c.bf16 %v1453, %v1452
        %v1513 = vpack.c.bf16 %v1455, %v1454
        %v1514 = vpack.c.bf16 %v1457, %v1456
        %v1515 = vpack.c.bf16 %v1459, %v1458
        %v1516 = vpack.c.bf16 %v1461, %v1460
        %v1517 = vpack.c.bf16 %v1463, %v1462
        %v1518 = vpack.c.bf16 %v1465, %v1464
        %v1519 = vpack.c.bf16 %v1467, %v1466
        %v1520 = vpack.c.bf16 %v1469, %v1468
        %v1521 = vpack.c.bf16 %v1471, %v1470
        %v1522 = vpack.c.bf16 %v1473, %v1472
        %v1523 = vpack.c.bf16 %v1475, %v1474
        %v1524 = vpack.c.bf16 %v1477, %v1476
        %v1525 = vpack.c.bf16 %v1479, %v1478
        %v1526 = vpack.c.bf16 %v1481, %v1480
        %v1527 = vpack.c.bf16 %v1483, %v1482
        %v1528 = vpack.c.bf16 %v1485, %v1484
        %v1529 = vpack.c.bf16 %v1487, %v1486
        %v1530 = vpack.c.bf16 %v1489, %v1488
        %v1531 = vpack.c.bf16 %v1491, %v1490
        %v1532 = vpack.c.bf16 %v1493, %v1492
        %v1533 = vpack.c.bf16 %v1495, %v1494
        %v1534 = vpack.c.bf16 %v1497, %v1496
        %v1535 = vpack.c.bf16 %v1499, %v1498
        %v1536 = vpack.c.bf16 %v1501, %v1500
        %v1537 = vpack.c.bf16 %v1503, %v1502
        %v1538 = vpack.c.bf16 %v1505, %v1504
        %v1539 = vpack.c.bf16 %v1507, %v1506
        %v1540 = vld [vmem:[%s5] sm:$0xf]
        %v1541 = vld [vmem:[%s5 + $0x4] sm:$0xf]
        %v1542 = vld [vmem:[%s5 + $0x8] sm:$0xf]
        %v1543 = vld [vmem:[%s5 + $0xc] sm:$0xf]
        %v1544 = vld [vmem:[%s5 + $0x10] sm:$0xf]
        %v1545 = vld [vmem:[%s5 + $0x14] sm:$0xf]
        %v1546 = vld [vmem:[%s5 + $0x18] sm:$0xf]
        %v1547 = vld [vmem:[%s5 + $0x1c] sm:$0xf]
        %v1548 = vld [vmem:[%s5 + $0x20] sm:$0xf]
        %v1549 = vld [vmem:[%s5 + $0x24] sm:$0xf]
        %v1550 = vld [vmem:[%s5 + $0x28] sm:$0xf]
        %v1551 = vld [vmem:[%s5 + $0x2c] sm:$0xf]
        %v1552 = vld [vmem:[%s5 + $0x30] sm:$0xf]
        %v1553 = vld [vmem:[%s5 + $0x34] sm:$0xf]
        %v1554 = vld [vmem:[%s5 + $0x38] sm:$0xf]
        %v1555 = vld [vmem:[%s5 + $0x3c] sm:$0xf]
        %v1556 = vld [vmem:[%s6] sm:$0x1]
        %v1558 = vlaneseq
        %v1559 = vshrl.u32 %v1558, 7
        %v1560 = vsub.s32 0, %v1559
        %v1561 = vrot.slane %v1556, %v1560
        %v1579 = vunpack.c.l.b16 %v1540
        %v1580 = vunpack.c.l.b16 %v1541
        %v1581 = vunpack.c.l.b16 %v1542
        %v1582 = vunpack.c.l.b16 %v1543
        %v1583 = vunpack.c.l.b16 %v1544
        %v1584 = vunpack.c.l.b16 %v1545
        %v1585 = vunpack.c.l.b16 %v1546
        %v1586 = vunpack.c.l.b16 %v1547
        %v1587 = vunpack.c.l.b16 %v1548
        %v1588 = vunpack.c.l.b16 %v1549
        %v1589 = vunpack.c.l.b16 %v1550
        %v1590 = vunpack.c.l.b16 %v1551
        %v1591 = vunpack.c.l.b16 %v1552
        %v1592 = vunpack.c.l.b16 %v1553
        %v1593 = vunpack.c.l.b16 %v1554
        %v1594 = vunpack.c.l.b16 %v1555
        %v1595 = vpack.c.b16 %v1580, %v1579
        %v1596 = vpack.c.b16 %v1582, %v1581
        %v1597 = vpack.c.b16 %v1584, %v1583
        %v1598 = vpack.c.b16 %v1586, %v1585
        %v1599 = vpack.c.b16 %v1588, %v1587
        %v1600 = vpack.c.b16 %v1590, %v1589
        %v1601 = vpack.c.b16 %v1592, %v1591
        %v1602 = vpack.c.b16 %v1594, %v1593
        %1611 = vmatprep.subr.bf16.mxu0 0
        %1612 = vmatpush1.bf16.msra.mxu0 %v1595
        %1613 = vmatprep.subr.bf16.mxu0 0
        %1614 = vmatpush1.bf16.msra.mxu0 %v1596
        %1615 = vmatprep.subr.bf16.mxu0 0
        %1616 = vmatpush1.bf16.msra.mxu0 %v1597
        %1617 = vmatprep.subr.bf16.mxu0 0
        %1618 = vmatpush1.bf16.msra.mxu0 %v1598
        %1619 = vmatprep.subr.bf16.mxu0 0
        %1620 = vmatpush1.bf16.msra.mxu0 %v1599
        %1621 = vmatprep.subr.bf16.mxu0 0
        %1622 = vmatpush1.bf16.msra.mxu0 %v1600
        %1623 = vmatprep.subr.bf16.mxu0 0
        %1624 = vmatpush1.bf16.msra.mxu0 %v1601
        %1625 = vmatprep.subr.bf16.mxu0 0
        %1626 = vmatpush1.bf16.msra.mxu0 %v1602
        %1627 = vmatprep.subr.bf16.mxu0 0
        %1628 = vmatpush1.bf16.msra.mxu0 0
        %1629 = vmatprep.subr.bf16.mxu0 0
        %1630 = vmatpush1.bf16.msra.mxu0 0
        %1631 = vmatprep.subr.bf16.mxu0 0
        %1632 = vmatpush1.bf16.msra.mxu0 0
        %1633 = vmatprep.subr.bf16.mxu0 0
        %1634 = vmatpush1.bf16.msra.mxu0 0
        %1635 = vmatprep.subr.bf16.mxu0 0
        %1636 = vmatpush1.bf16.msra.mxu0 0
        %1637 = vmatprep.subr.bf16.mxu0 0
        %1638 = vmatpush1.bf16.msra.mxu0 0
        %1639 = vmatprep.subr.bf16.mxu0 0
        %1640 = vmatpush1.bf16.msra.mxu0 0
        %1641 = vmatprep.subr.bf16.mxu0 0
        %1642 = vmatpush1.bf16.msra.mxu0 0
        %1643 = vmatprep.mubr.bf16.mxu0 0
        %1644 = vmatmul.mubr.bf16.gmra.mrb[0].mxu0 %v1508
        %v1645 = vpop.f32.mrb[0].mxu0
        %v1646 = vadd.f32 %v1561, %v1645
        %v1647 = vpop.f32.mrb[0].mxu0
        %v1648 = vpop.f32.mrb[0].mxu0
        %v1649 = vadd.f32 %v1561, %v1648
        %v1650 = vpop.f32.mrb[0].mxu0
        %1651 = vmatprep.mubr.bf16.mxu0 0
        %1652 = vmatmul.mubr.bf16.gmra.mrb[0].mxu0 %v1509
        %v1653 = vpop.f32.mrb[0].mxu0
        %v1654 = vadd.f32 %v1561, %v1653
        %v1655 = vpop.f32.mrb[0].mxu0
        %v1656 = vpop.f32.mrb[0].mxu0
        %v1657 = vadd.f32 %v1561, %v1656
        %v1658 = vpop.f32.mrb[0].mxu0
        %1659 = vmatprep.mubr.bf16.mxu0 0
        %1660 = vmatmul.mubr.bf16.gmra.mrb[0].mxu0 %v1510
        %v1661 = vpop.f32.mrb[0].mxu0
        %v1662 = vadd.f32 %v1561, %v1661
        %v1663 = vpop.f32.mrb[0].mxu0
        %v1664 = vpop.f32.mrb[0].mxu0
        %v1665 = vadd.f32 %v1561, %v1664
        %v1666 = vpop.f32.mrb[0].mxu0
        %1667 = vmatprep.mubr.bf16.mxu0 0
        %1668 = vmatmul.mubr.bf16.gmra.mrb[0].mxu0 %v1511
        %v1669 = vpop.f32.mrb[0].mxu0
        %v1670 = vadd.f32 %v1561, %v1669
        %v1671 = vpop.f32.mrb[0].mxu0
        %v1672 = vpop.f32.mrb[0].mxu0
        %v1673 = vadd.f32 %v1561, %v1672
        %v1674 = vpop.f32.mrb[0].mxu0
        %1675 = vmatprep.mubr.bf16.mxu0 0
        %1676 = vmatmul.mubr.bf16.gmra.mrb[0].mxu0 %v1512
        %v1677 = vpop.f32.mrb[0].mxu0
        %v1678 = vadd.f32 %v1561, %v1677
        %v1679 = vpop.f32.mrb[0].mxu0
        %v1680 = vpop.f32.mrb[0].mxu0
        %v1681 = vadd.f32 %v1561, %v1680
        %v1682 = vpop.f32.mrb[0].mxu0
        %1683 = vmatprep.mubr.bf16.mxu0 0
        %1684 = vmatmul.mubr.bf16.gmra.mrb[0].mxu0 %v1513
        %v1685 = vpop.f32.mrb[0].mxu0
        %v1686 = vadd.f32 %v1561, %v1685
        %v1687 = vpop.f32.mrb[0].mxu0
        %v1688 = vpop.f32.mrb[0].mxu0
        %v1689 = vadd.f32 %v1561, %v1688
        %v1690 = vpop.f32.mrb[0].mxu0
        %1691 = vmatprep.mubr.bf16.mxu0 0
        %1692 = vmatmul.mubr.bf16.gmra.mrb[0].mxu0 %v1514
        %v1693 = vpop.f32.mrb[0].mxu0
        %v1694 = vadd.f32 %v1561, %v1693
        %v1695 = vpop.f32.mrb[0].mxu0
        %v1696 = vpop.f32.mrb[0].mxu0
        %v1697 = vadd.f32 %v1561, %v1696
        %v1698 = vpop.f32.mrb[0].mxu0
        %1699 = vmatprep.mubr.bf16.mxu0 0
        %1700 = vmatmul.mubr.bf16.gmra.mrb[0].mxu0 %v1515
        %v1701 = vpop.f32.mrb[0].mxu0
        %v1702 = vadd.f32 %v1561, %v1701
        %v1703 = vpop.f32.mrb[0].mxu0
        %v1704 = vpop.f32.mrb[0].mxu0
        %v1705 = vadd.f32 %v1561, %v1704
        %v1706 = vpop.f32.mrb[0].mxu0
        %1707 = vmatprep.mubr.bf16.mxu0 0
        %1708 = vmatmul.mubr.bf16.gmra.mrb[0].mxu0 %v1516
        %v1709 = vpop.f32.mrb[0].mxu0
        %v1710 = vadd.f32 %v1561, %v1709
        %v1711 = vpop.f32.mrb[0].mxu0
        %v1712 = vpop.f32.mrb[0].mxu0
        %v1713 = vadd.f32 %v1561, %v1712
        %v1714 = vpop.f32.mrb[0].mxu0
        %1715 = vmatprep.mubr.bf16.mxu0 0
        %1716 = vmatmul.mubr.bf16.gmra.mrb[0].mxu0 %v1517
        %v1717 = vpop.f32.mrb[0].mxu0
        %v1718 = vadd.f32 %v1561, %v1717
        %v1719 = vpop.f32.mrb[0].mxu0
        %v1720 = vpop.f32.mrb[0].mxu0
        %v1721 = vadd.f32 %v1561, %v1720
        %v1722 = vpop.f32.mrb[0].mxu0
        %1723 = vmatprep.mubr.bf16.mxu0 0
        %1724 = vmatmul.mubr.bf16.gmra.mrb[0].mxu0 %v1518
        %v1725 = vpop.f32.mrb[0].mxu0
        %v1726 = vadd.f32 %v1561, %v1725
        %v1727 = vpop.f32.mrb[0].mxu0
        %v1728 = vpop.f32.mrb[0].mxu0
        %v1729 = vadd.f32 %v1561, %v1728
        %v1730 = vpop.f32.mrb[0].mxu0
        %1731 = vmatprep.mubr.bf16.mxu0 0
        %1732 = vmatmul.mubr.bf16.gmra.mrb[0].mxu0 %v1519
        %v1733 = vpop.f32.mrb[0].mxu0
        %v1734 = vadd.f32 %v1561, %v1733
        %v1735 = vpop.f32.mrb[0].mxu0
        %v1736 = vpop.f32.mrb[0].mxu0
        %v1737 = vadd.f32 %v1561, %v1736
        %v1738 = vpop.f32.mrb[0].mxu0
        %1739 = vmatprep.mubr.bf16.mxu0 0
        %1740 = vmatmul.mubr.bf16.gmra.mrb[0].mxu0 %v1520
        %v1741 = vpop.f32.mrb[0].mxu0
        %v1742 = vadd.f32 %v1561, %v1741
        %v1743 = vpop.f32.mrb[0].mxu0
        %v1744 = vpop.f32.mrb[0].mxu0
        %v1745 = vadd.f32 %v1561, %v1744
        %v1746 = vpop.f32.mrb[0].mxu0
        %1747 = vmatprep.mubr.bf16.mxu0 0
        %1748 = vmatmul.mubr.bf16.gmra.mrb[0].mxu0 %v1521
        %v1749 = vpop.f32.mrb[0].mxu0
        %v1750 = vadd.f32 %v1561, %v1749
        %v1751 = vpop.f32.mrb[0].mxu0
        %v1752 = vpop.f32.mrb[0].mxu0
        %v1753 = vadd.f32 %v1561, %v1752
        %v1754 = vpop.f32.mrb[0].mxu0
        %1755 = vmatprep.mubr.bf16.mxu0 0
        %1756 = vmatmul.mubr.bf16.gmra.mrb[0].mxu0 %v1522
        %v1757 = vpop.f32.mrb[0].mxu0
        %v1758 = vadd.f32 %v1561, %v1757
        %v1759 = vpop.f32.mrb[0].mxu0
        %v1760 = vpop.f32.mrb[0].mxu0
        %v1761 = vadd.f32 %v1561, %v1760
        %v1762 = vpop.f32.mrb[0].mxu0
        %1763 = vmatprep.mubr.bf16.mxu0 0
        %1764 = vmatmul.mubr.bf16.gmra.mrb[0].mxu0 %v1523
        %v1765 = vpop.f32.mrb[0].mxu0
        %v1766 = vadd.f32 %v1561, %v1765
        %v1767 = vpop.f32.mrb[0].mxu0
        %v1768 = vpop.f32.mrb[0].mxu0
        %v1769 = vadd.f32 %v1561, %v1768
        %v1770 = vpop.f32.mrb[0].mxu0
        %1771 = vmatprep.mubr.bf16.mxu0 0
        %1772 = vmatmul.mubr.bf16.gmra.mrb[0].mxu0 %v1524
        %v1773 = vpop.f32.mrb[0].mxu0
        %v1774 = vadd.f32 %v1561, %v1773
        %v1775 = vpop.f32.mrb[0].mxu0
        %v1776 = vpop.f32.mrb[0].mxu0
        %v1777 = vadd.f32 %v1561, %v1776
        %v1778 = vpop.f32.mrb[0].mxu0
        %1779 = vmatprep.mubr.bf16.mxu0 0
        %1780 = vmatmul.mubr.bf16.gmra.mrb[0].mxu0 %v1525
        %v1781 = vpop.f32.mrb[0].mxu0
        %v1782 = vadd.f32 %v1561, %v1781
        %v1783 = vpop.f32.mrb[0].mxu0
        %v1784 = vpop.f32.mrb[0].mxu0
        %v1785 = vadd.f32 %v1561, %v1784
        %v1786 = vpop.f32.mrb[0].mxu0
        %1787 = vmatprep.mubr.bf16.mxu0 0
        %1788 = vmatmul.mubr.bf16.gmra.mrb[0].mxu0 %v1526
        %v1789 = vpop.f32.mrb[0].mxu0
        %v1790 = vadd.f32 %v1561, %v1789
        %v1791 = vpop.f32.mrb[0].mxu0
        %v1792 = vpop.f32.mrb[0].mxu0
        %v1793 = vadd.f32 %v1561, %v1792
        %v1794 = vpop.f32.mrb[0].mxu0
        %1795 = vmatprep.mubr.bf16.mxu0 0
        %1796 = vmatmul.mubr.bf16.gmra.mrb[0].mxu0 %v1527
        %v1797 = vpop.f32.mrb[0].mxu0
        %v1798 = vadd.f32 %v1561, %v1797
        %v1799 = vpop.f32.mrb[0].mxu0
        %v1800 = vpop.f32.mrb[0].mxu0
        %v1801 = vadd.f32 %v1561, %v1800
        %v1802 = vpop.f32.mrb[0].mxu0
        %1803 = vmatprep.mubr.bf16.mxu0 0
        %1804 = vmatmul.mubr.bf16.gmra.mrb[0].mxu0 %v1528
        %v1805 = vpop.f32.mrb[0].mxu0
        %v1806 = vadd.f32 %v1561, %v1805
        %v1807 = vpop.f32.mrb[0].mxu0
        %v1808 = vpop.f32.mrb[0].mxu0
        %v1809 = vadd.f32 %v1561, %v1808
        %v1810 = vpop.f32.mrb[0].mxu0
        %1811 = vmatprep.mubr.bf16.mxu0 0
        %1812 = vmatmul.mubr.bf16.gmra.mrb[0].mxu0 %v1529
        %v1813 = vpop.f32.mrb[0].mxu0
        %v1814 = vadd.f32 %v1561, %v1813
        %v1815 = vpop.f32.mrb[0].mxu0
        %v1816 = vpop.f32.mrb[0].mxu0
        %v1817 = vadd.f32 %v1561, %v1816
        %v1818 = vpop.f32.mrb[0].mxu0
        %1819 = vmatprep.mubr.bf16.mxu0 0
        %1820 = vmatmul.mubr.bf16.gmra.mrb[0].mxu0 %v1530
        %v1821 = vpop.f32.mrb[0].mxu0
        %v1822 = vadd.f32 %v1561, %v1821
        %v1823 = vpop.f32.mrb[0].mxu0
        %v1824 = vpop.f32.mrb[0].mxu0
        %v1825 = vadd.f32 %v1561, %v1824
        %v1826 = vpop.f32.mrb[0].mxu0
        %1827 = vmatprep.mubr.bf16.mxu0 0
        %1828 = vmatmul.mubr.bf16.gmra.mrb[0].mxu0 %v1531
        %v1829 = vpop.f32.mrb[0].mxu0
        %v1830 = vadd.f32 %v1561, %v1829
        %v1831 = vpop.f32.mrb[0].mxu0
        %v1832 = vpop.f32.mrb[0].mxu0
        %v1833 = vadd.f32 %v1561, %v1832
        %v1834 = vpop.f32.mrb[0].mxu0
        %1835 = vmatprep.mubr.bf16.mxu0 0
        %1836 = vmatmul.mubr.bf16.gmra.mrb[0].mxu0 %v1532
        %v1837 = vpop.f32.mrb[0].mxu0
        %v1838 = vadd.f32 %v1561, %v1837
        %v1839 = vpop.f32.mrb[0].mxu0
        %v1840 = vpop.f32.mrb[0].mxu0
        %v1841 = vadd.f32 %v1561, %v1840
        %v1842 = vpop.f32.mrb[0].mxu0
        %1843 = vmatprep.mubr.bf16.mxu0 0
        %1844 = vmatmul.mubr.bf16.gmra.mrb[0].mxu0 %v1533
        %v1845 = vpop.f32.mrb[0].mxu0
        %v1846 = vadd.f32 %v1561, %v1845
        %v1847 = vpop.f32.mrb[0].mxu0
        %v1848 = vpop.f32.mrb[0].mxu0
        %v1849 = vadd.f32 %v1561, %v1848
        %v1850 = vpop.f32.mrb[0].mxu0
        %1851 = vmatprep.mubr.bf16.mxu0 0
        %1852 = vmatmul.mubr.bf16.gmra.mrb[0].mxu0 %v1534
        %v1853 = vpop.f32.mrb[0].mxu0
        %v1854 = vadd.f32 %v1561, %v1853
        %v1855 = vpop.f32.mrb[0].mxu0
        %v1856 = vpop.f32.mrb[0].mxu0
        %v1857 = vadd.f32 %v1561, %v1856
        %v1858 = vpop.f32.mrb[0].mxu0
        %1859 = vmatprep.mubr.bf16.mxu0 0
        %1860 = vmatmul.mubr.bf16.gmra.mrb[0].mxu0 %v1535
        %v1861 = vpop.f32.mrb[0].mxu0
        %v1862 = vadd.f32 %v1561, %v1861
        %v1863 = vpop.f32.mrb[0].mxu0
        %v1864 = vpop.f32.mrb[0].mxu0
        %v1865 = vadd.f32 %v1561, %v1864
        %v1866 = vpop.f32.mrb[0].mxu0
        %1867 = vmatprep.mubr.bf16.mxu0 0
        %1868 = vmatmul.mubr.bf16.gmra.mrb[0].mxu0 %v1536
        %v1869 = vpop.f32.mrb[0].mxu0
        %v1870 = vadd.f32 %v1561, %v1869
        %v1871 = vpop.f32.mrb[0].mxu0
        %v1872 = vpop.f32.mrb[0].mxu0
        %v1873 = vadd.f32 %v1561, %v1872
        %v1874 = vpop.f32.mrb[0].mxu0
        %1875 = vmatprep.mubr.bf16.mxu0 0
        %1876 = vmatmul.mubr.bf16.gmra.mrb[0].mxu0 %v1537
        %v1877 = vpop.f32.mrb[0].mxu0
        %v1878 = vadd.f32 %v1561, %v1877
        %v1879 = vpop.f32.mrb[0].mxu0
        %v1880 = vpop.f32.mrb[0].mxu0
        %v1881 = vadd.f32 %v1561, %v1880
        %v1882 = vpop.f32.mrb[0].mxu0
        %1883 = vmatprep.mubr.bf16.mxu0 0
        %1884 = vmatmul.mubr.bf16.gmra.mrb[0].mxu0 %v1538
        %v1885 = vpop.f32.mrb[0].mxu0
        %v1886 = vadd.f32 %v1561, %v1885
        %v1887 = vpop.f32.mrb[0].mxu0
        %v1888 = vpop.f32.mrb[0].mxu0
        %v1889 = vadd.f32 %v1561, %v1888
        %v1890 = vpop.f32.mrb[0].mxu0
        %1891 = vmatprep.mubr.bf16.mxu0 0
        %1892 = vmatmul.mubr.bf16.gmra.mrb[0].mxu0 %v1539
        %v1893 = vpop.f32.mrb[0].mxu0
        %v1894 = vadd.f32 %v1561, %v1893
        %v1895 = vpop.f32.mrb[0].mxu0
        %v1896 = vpop.f32.mrb[0].mxu0
        %v1897 = vadd.f32 %v1561, %v1896
        %v1898 = vpop.f32.mrb[0].mxu0
        %1899 = vdwg.mxu0
        %v1900 = vmax.f32 %v1646, 0.0
        %v1901 = vmax.f32 %v1649, 0.0
        %v1902 = vmax.f32 %v1654, 0.0
        %v1903 = vmax.f32 %v1657, 0.0
        %v1904 = vmax.f32 %v1662, 0.0
        %v1905 = vmax.f32 %v1665, 0.0
        %v1906 = vmax.f32 %v1670, 0.0
        %v1907 = vmax.f32 %v1673, 0.0
        %v1908 = vmax.f32 %v1678, 0.0
        %v1909 = vmax.f32 %v1681, 0.0
        %v1910 = vmax.f32 %v1686, 0.0
        %v1911 = vmax.f32 %v1689, 0.0
        %v1912 = vmax.f32 %v1694, 0.0
        %v1913 = vmax.f32 %v1697, 0.0
        %v1914 = vmax.f32 %v1702, 0.0
        %v1915 = vmax.f32 %v1705, 0.0
        %v1916 = vmax.f32 %v1710, 0.0
        %v1917 = vmax.f32 %v1713, 0.0
        %v1918 = vmax.f32 %v1718, 0.0
        %v1919 = vmax.f32 %v1721, 0.0
        %v1920 = vmax.f32 %v1726, 0.0
        %v1921 = vmax.f32 %v1729, 0.0
        %v1922 = vmax.f32 %v1734, 0.0
        %v1923 = vmax.f32 %v1737, 0.0
        %v1924 = vmax.f32 %v1742, 0.0
        %v1925 = vmax.f32 %v1745, 0.0
        %v1926 = vmax.f32 %v1750, 0.0
        %v1927 = vmax.f32 %v1753, 0.0
        %v1928 = vmax.f32 %v1758, 0.0
        %v1929 = vmax.f32 %v1761, 0.0
        %v1930 = vmax.f32 %v1766, 0.0
        %v1931 = vmax.f32 %v1769, 0.0
        %v1932 = vmax.f32 %v1774, 0.0
        %v1933 = vmax.f32 %v1777, 0.0
        %v1934 = vmax.f32 %v1782, 0.0
        %v1935 = vmax.f32 %v1785, 0.0
        %v1936 = vmax.f32 %v1790, 0.0
        %v1937 = vmax.f32 %v1793, 0.0
        %v1938 = vmax.f32 %v1798, 0.0
        %v1939 = vmax.f32 %v1801, 0.0
        %v1940 = vmax.f32 %v1806, 0.0
        %v1941 = vmax.f32 %v1809, 0.0
        %v1942 = vmax.f32 %v1814, 0.0
        %v1943 = vmax.f32 %v1817, 0.0
        %v1944 = vmax.f32 %v1822, 0.0
        %v1945 = vmax.f32 %v1825, 0.0
        %v1946 = vmax.f32 %v1830, 0.0
        %v1947 = vmax.f32 %v1833, 0.0
        %v1948 = vmax.f32 %v1838, 0.0
        %v1949 = vmax.f32 %v1841, 0.0
        %v1950 = vmax.f32 %v1846, 0.0
        %v1951 = vmax.f32 %v1849, 0.0
        %v1952 = vmax.f32 %v1854, 0.0
        %v1953 = vmax.f32 %v1857, 0.0
        %v1954 = vmax.f32 %v1862, 0.0
        %v1955 = vmax.f32 %v1865, 0.0
        %v1956 = vmax.f32 %v1870, 0.0
        %v1957 = vmax.f32 %v1873, 0.0
        %v1958 = vmax.f32 %v1878, 0.0
        %v1959 = vmax.f32 %v1881, 0.0
        %v1960 = vmax.f32 %v1886, 0.0
        %v1961 = vmax.f32 %v1889, 0.0
        %v1962 = vmax.f32 %v1894, 0.0
        %v1963 = vmax.f32 %v1897, 0.0
        %v1964 = vpack.c.bf16 %v1901, %v1900
        %v1965 = vpack.c.bf16 %v1903, %v1902
        %v1966 = vpack.c.bf16 %v1905, %v1904
        %v1967 = vpack.c.bf16 %v1907, %v1906
        %v1968 = vpack.c.bf16 %v1909, %v1908
        %v1969 = vpack.c.bf16 %v1911, %v1910
        %v1970 = vpack.c.bf16 %v1913, %v1912
        %v1971 = vpack.c.bf16 %v1915, %v1914
        %v1972 = vpack.c.bf16 %v1917, %v1916
        %v1973 = vpack.c.bf16 %v1919, %v1918
        %v1974 = vpack.c.bf16 %v1921, %v1920
        %v1975 = vpack.c.bf16 %v1923, %v1922
        %v1976 = vpack.c.bf16 %v1925, %v1924
        %v1977 = vpack.c.bf16 %v1927, %v1926
        %v1978 = vpack.c.bf16 %v1929, %v1928
        %v1979 = vpack.c.bf16 %v1931, %v1930
        %v1980 = vpack.c.bf16 %v1933, %v1932
        %v1981 = vpack.c.bf16 %v1935, %v1934
        %v1982 = vpack.c.bf16 %v1937, %v1936
        %v1983 = vpack.c.bf16 %v1939, %v1938
        %v1984 = vpack.c.bf16 %v1941, %v1940
        %v1985 = vpack.c.bf16 %v1943, %v1942
        %v1986 = vpack.c.bf16 %v1945, %v1944
        %v1987 = vpack.c.bf16 %v1947, %v1946
        %v1988 = vpack.c.bf16 %v1949, %v1948
        %v1989 = vpack.c.bf16 %v1951, %v1950
        %v1990 = vpack.c.bf16 %v1953, %v1952
        %v1991 = vpack.c.bf16 %v1955, %v1954
        %v1992 = vpack.c.bf16 %v1957, %v1956
        %v1993 = vpack.c.bf16 %v1959, %v1958
        %v1994 = vpack.c.bf16 %v1961, %v1960
        %v1995 = vpack.c.bf16 %v1963, %v1962
        %v1996 = vld [vmem:[%s7] sm:$0xf]
        %v1997 = vld [vmem:[%s7 + $0x4] sm:$0xf]
        %v1998 = vld [vmem:[%s7 + $0x8] sm:$0xf]
        %v1999 = vld [vmem:[%s7 + $0xc] sm:$0xf]
        %v2000 = vld [vmem:[%s7 + $0x10] sm:$0xf]
        %v2001 = vld [vmem:[%s7 + $0x14] sm:$0xf]
        %v2002 = vld [vmem:[%s7 + $0x18] sm:$0xf]
        %v2003 = vld [vmem:[%s7 + $0x1c] sm:$0xf]
        %v2004 = vld [vmem:[%s7 + $0x20] sm:$0xf]
        %v2005 = vld [vmem:[%s7 + $0x24] sm:$0xf]
        %v2006 = vld [vmem:[%s7 + $0x28] sm:$0xf]
        %v2007 = vld [vmem:[%s7 + $0x2c] sm:$0xf]
        %v2008 = vld [vmem:[%s7 + $0x30] sm:$0xf]
        %v2009 = vld [vmem:[%s7 + $0x34] sm:$0xf]
        %v2010 = vld [vmem:[%s7 + $0x38] sm:$0xf]
        %v2011 = vld [vmem:[%s7 + $0x3c] sm:$0xf]
        %v2012 = vld [vmem:[%s8] sm:$0x1]
        %v2014 = vlaneseq
        %v2015 = vshrl.u32 %v2014, 7
        %v2016 = vsub.s32 0, %v2015
        %v2017 = vrot.slane %v2012, %v2016
        %v2035 = vunpack.c.l.b16 %v1996
        %v2036 = vunpack.c.l.b16 %v1997
        %v2037 = vunpack.c.l.b16 %v1998
        %v2038 = vunpack.c.l.b16 %v1999
        %v2039 = vunpack.c.l.b16 %v2000
        %v2040 = vunpack.c.l.b16 %v2001
        %v2041 = vunpack.c.l.b16 %v2002
        %v2042 = vunpack.c.l.b16 %v2003
        %v2043 = vunpack.c.l.b16 %v2004
        %v2044 = vunpack.c.l.b16 %v2005
        %v2045 = vunpack.c.l.b16 %v2006
        %v2046 = vunpack.c.l.b16 %v2007
        %v2047 = vunpack.c.l.b16 %v2008
        %v2048 = vunpack.c.l.b16 %v2009
        %v2049 = vunpack.c.l.b16 %v2010
        %v2050 = vunpack.c.l.b16 %v2011
        %v2051 = vpack.c.b16 %v2036, %v2035
        %v2052 = vpack.c.b16 %v2038, %v2037
        %v2053 = vpack.c.b16 %v2040, %v2039
        %v2054 = vpack.c.b16 %v2042, %v2041
        %v2055 = vpack.c.b16 %v2044, %v2043
        %v2056 = vpack.c.b16 %v2046, %v2045
        %v2057 = vpack.c.b16 %v2048, %v2047
        %v2058 = vpack.c.b16 %v2050, %v2049
        %2067 = vmatprep.subr.bf16.mxu0 0
        %2068 = vmatpush1.bf16.msra.mxu0 %v2051
        %2069 = vmatprep.subr.bf16.mxu0 0
        %2070 = vmatpush1.bf16.msra.mxu0 %v2052
        %2071 = vmatprep.subr.bf16.mxu0 0
        %2072 = vmatpush1.bf16.msra.mxu0 %v2053
        %2073 = vmatprep.subr.bf16.mxu0 0
        %2074 = vmatpush1.bf16.msra.mxu0 %v2054
        %2075 = vmatprep.subr.bf16.mxu0 0
        %2076 = vmatpush1.bf16.msra.mxu0 %v2055
        %2077 = vmatprep.subr.bf16.mxu0 0
        %2078 = vmatpush1.bf16.msra.mxu0 %v2056
        %2079 = vmatprep.subr.bf16.mxu0 0
        %2080 = vmatpush1.bf16.msra.mxu0 %v2057
        %2081 = vmatprep.subr.bf16.mxu0 0
        %2082 = vmatpush1.bf16.msra.mxu0 %v2058
        %2083 = vmatprep.subr.bf16.mxu0 0
        %2084 = vmatpush1.bf16.msra.mxu0 0
        %2085 = vmatprep.subr.bf16.mxu0 0
        %2086 = vmatpush1.bf16.msra.mxu0 0
        %2087 = vmatprep.subr.bf16.mxu0 0
        %2088 = vmatpush1.bf16.msra.mxu0 0
        %2089 = vmatprep.subr.bf16.mxu0 0
        %2090 = vmatpush1.bf16.msra.mxu0 0
        %2091 = vmatprep.subr.bf16.mxu0 0
        %2092 = vmatpush1.bf16.msra.mxu0 0
        %2093 = vmatprep.subr.bf16.mxu0 0
        %2094 = vmatpush1.bf16.msra.mxu0 0
        %2095 = vmatprep.subr.bf16.mxu0 0
        %2096 = vmatpush1.bf16.msra.mxu0 0
        %2097 = vmatprep.subr.bf16.mxu0 0
        %2098 = vmatpush1.bf16.msra.mxu0 0
        %2099 = vmatprep.mubr.bf16.mxu0 0
        %2100 = vmatmul.mubr.bf16.gmra.mrb[0].mxu0 %v1964
        %v2101 = vpop.f32.mrb[0].mxu0
        %v2102 = vadd.f32 %v2017, %v2101
        %v2103 = vpop.f32.mrb[0].mxu0
        %v2104 = vpop.f32.mrb[0].mxu0
        %v2105 = vadd.f32 %v2017, %v2104
        %v2106 = vpop.f32.mrb[0].mxu0
        %2107 = vmatprep.mubr.bf16.mxu0 0
        %2108 = vmatmul.mubr.bf16.gmra.mrb[0].mxu0 %v1965
        %v2109 = vpop.f32.mrb[0].mxu0
        %v2110 = vadd.f32 %v2017, %v2109
        %v2111 = vpop.f32.mrb[0].mxu0
        %v2112 = vpop.f32.mrb[0].mxu0
        %v2113 = vadd.f32 %v2017, %v2112
        %v2114 = vpop.f32.mrb[0].mxu0
        %2115 = vmatprep.mubr.bf16.mxu0 0
        %2116 = vmatmul.mubr.bf16.gmra.mrb[0].mxu0 %v1966
        %v2117 = vpop.f32.mrb[0].mxu0
        %v2118 = vadd.f32 %v2017, %v2117
        %v2119 = vpop.f32.mrb[0].mxu0
        %v2120 = vpop.f32.mrb[0].mxu0
        %v2121 = vadd.f32 %v2017, %v2120
        %v2122 = vpop.f32.mrb[0].mxu0
        %2123 = vmatprep.mubr.bf16.mxu0 0
        %2124 = vmatmul.mubr.bf16.gmra.mrb[0].mxu0 %v1967
        %v2125 = vpop.f32.mrb[0].mxu0
        %v2126 = vadd.f32 %v2017, %v2125
        %v2127 = vpop.f32.mrb[0].mxu0
        %v2128 = vpop.f32.mrb[0].mxu0
        %v2129 = vadd.f32 %v2017, %v2128
        %v2130 = vpop.f32.mrb[0].mxu0
        %2131 = vmatprep.mubr.bf16.mxu0 0
        %2132 = vmatmul.mubr.bf16.gmra.mrb[0].mxu0 %v1968
        %v2133 = vpop.f32.mrb[0].mxu0
        %v2134 = vadd.f32 %v2017, %v2133
        %v2135 = vpop.f32.mrb[0].mxu0
        %v2136 = vpop.f32.mrb[0].mxu0
        %v2137 = vadd.f32 %v2017, %v2136
        %v2138 = vpop.f32.mrb[0].mxu0
        %2139 = vmatprep.mubr.bf16.mxu0 0
        %2140 = vmatmul.mubr.bf16.gmra.mrb[0].mxu0 %v1969
        %v2141 = vpop.f32.mrb[0].mxu0
        %v2142 = vadd.f32 %v2017, %v2141
        %v2143 = vpop.f32.mrb[0].mxu0
        %v2144 = vpop.f32.mrb[0].mxu0
        %v2145 = vadd.f32 %v2017, %v2144
        %v2146 = vpop.f32.mrb[0].mxu0
        %2147 = vmatprep.mubr.bf16.mxu0 0
        %2148 = vmatmul.mubr.bf16.gmra.mrb[0].mxu0 %v1970
        %v2149 = vpop.f32.mrb[0].mxu0
        %v2150 = vadd.f32 %v2017, %v2149
        %v2151 = vpop.f32.mrb[0].mxu0
        %v2152 = vpop.f32.mrb[0].mxu0
        %v2153 = vadd.f32 %v2017, %v2152
        %v2154 = vpop.f32.mrb[0].mxu0
        %2155 = vmatprep.mubr.bf16.mxu0 0
        %2156 = vmatmul.mubr.bf16.gmra.mrb[0].mxu0 %v1971
        %v2157 = vpop.f32.mrb[0].mxu0
        %v2158 = vadd.f32 %v2017, %v2157
        %v2159 = vpop.f32.mrb[0].mxu0
        %v2160 = vpop.f32.mrb[0].mxu0
        %v2161 = vadd.f32 %v2017, %v2160
        %v2162 = vpop.f32.mrb[0].mxu0
        %2163 = vmatprep.mubr.bf16.mxu0 0
        %2164 = vmatmul.mubr.bf16.gmra.mrb[0].mxu0 %v1972
        %v2165 = vpop.f32.mrb[0].mxu0
        %v2166 = vadd.f32 %v2017, %v2165
        %v2167 = vpop.f32.mrb[0].mxu0
        %v2168 = vpop.f32.mrb[0].mxu0
        %v2169 = vadd.f32 %v2017, %v2168
        %v2170 = vpop.f32.mrb[0].mxu0
        %2171 = vmatprep.mubr.bf16.mxu0 0
        %2172 = vmatmul.mubr.bf16.gmra.mrb[0].mxu0 %v1973
        %v2173 = vpop.f32.mrb[0].mxu0
        %v2174 = vadd.f32 %v2017, %v2173
        %v2175 = vpop.f32.mrb[0].mxu0
        %v2176 = vpop.f32.mrb[0].mxu0
        %v2177 = vadd.f32 %v2017, %v2176
        %v2178 = vpop.f32.mrb[0].mxu0
        %2179 = vmatprep.mubr.bf16.mxu0 0
        %2180 = vmatmul.mubr.bf16.gmra.mrb[0].mxu0 %v1974
        %v2181 = vpop.f32.mrb[0].mxu0
        %v2182 = vadd.f32 %v2017, %v2181
        %v2183 = vpop.f32.mrb[0].mxu0
        %v2184 = vpop.f32.mrb[0].mxu0
        %v2185 = vadd.f32 %v2017, %v2184
        %v2186 = vpop.f32.mrb[0].mxu0
        %2187 = vmatprep.mubr.bf16.mxu0 0
        %2188 = vmatmul.mubr.bf16.gmra.mrb[0].mxu0 %v1975
        %v2189 = vpop.f32.mrb[0].mxu0
        %v2190 = vadd.f32 %v2017, %v2189
        %v2191 = vpop.f32.mrb[0].mxu0
        %v2192 = vpop.f32.mrb[0].mxu0
        %v2193 = vadd.f32 %v2017, %v2192
        %v2194 = vpop.f32.mrb[0].mxu0
        %2195 = vmatprep.mubr.bf16.mxu0 0
        %2196 = vmatmul.mubr.bf16.gmra.mrb[0].mxu0 %v1976
        %v2197 = vpop.f32.mrb[0].mxu0
        %v2198 = vadd.f32 %v2017, %v2197
        %v2199 = vpop.f32.mrb[0].mxu0
        %v2200 = vpop.f32.mrb[0].mxu0
        %v2201 = vadd.f32 %v2017, %v2200
        %v2202 = vpop.f32.mrb[0].mxu0
        %2203 = vmatprep.mubr.bf16.mxu0 0
        %2204 = vmatmul.mubr.bf16.gmra.mrb[0].mxu0 %v1977
        %v2205 = vpop.f32.mrb[0].mxu0
        %v2206 = vadd.f32 %v2017, %v2205
        %v2207 = vpop.f32.mrb[0].mxu0
        %v2208 = vpop.f32.mrb[0].mxu0
        %v2209 = vadd.f32 %v2017, %v2208
        %v2210 = vpop.f32.mrb[0].mxu0
        %2211 = vmatprep.mubr.bf16.mxu0 0
        %2212 = vmatmul.mubr.bf16.gmra.mrb[0].mxu0 %v1978
        %v2213 = vpop.f32.mrb[0].mxu0
        %v2214 = vadd.f32 %v2017, %v2213
        %v2215 = vpop.f32.mrb[0].mxu0
        %v2216 = vpop.f32.mrb[0].mxu0
        %v2217 = vadd.f32 %v2017, %v2216
        %v2218 = vpop.f32.mrb[0].mxu0
        %2219 = vmatprep.mubr.bf16.mxu0 0
        %2220 = vmatmul.mubr.bf16.gmra.mrb[0].mxu0 %v1979
        %v2221 = vpop.f32.mrb[0].mxu0
        %v2222 = vadd.f32 %v2017, %v2221
        %v2223 = vpop.f32.mrb[0].mxu0
        %v2224 = vpop.f32.mrb[0].mxu0
        %v2225 = vadd.f32 %v2017, %v2224
        %v2226 = vpop.f32.mrb[0].mxu0
        %2227 = vmatprep.mubr.bf16.mxu0 0
        %2228 = vmatmul.mubr.bf16.gmra.mrb[0].mxu0 %v1980
        %v2229 = vpop.f32.mrb[0].mxu0
        %v2230 = vadd.f32 %v2017, %v2229
        %v2231 = vpop.f32.mrb[0].mxu0
        %v2232 = vpop.f32.mrb[0].mxu0
        %v2233 = vadd.f32 %v2017, %v2232
        %v2234 = vpop.f32.mrb[0].mxu0
        %2235 = vmatprep.mubr.bf16.mxu0 0
        %2236 = vmatmul.mubr.bf16.gmra.mrb[0].mxu0 %v1981
        %v2237 = vpop.f32.mrb[0].mxu0
        %v2238 = vadd.f32 %v2017, %v2237
        %v2239 = vpop.f32.mrb[0].mxu0
        %v2240 = vpop.f32.mrb[0].mxu0
        %v2241 = vadd.f32 %v2017, %v2240
        %v2242 = vpop.f32.mrb[0].mxu0
        %2243 = vmatprep.mubr.bf16.mxu0 0
        %2244 = vmatmul.mubr.bf16.gmra.mrb[0].mxu0 %v1982
        %v2245 = vpop.f32.mrb[0].mxu0
        %v2246 = vadd.f32 %v2017, %v2245
        %v2247 = vpop.f32.mrb[0].mxu0
        %v2248 = vpop.f32.mrb[0].mxu0
        %v2249 = vadd.f32 %v2017, %v2248
        %v2250 = vpop.f32.mrb[0].mxu0
        %2251 = vmatprep.mubr.bf16.mxu0 0
        %2252 = vmatmul.mubr.bf16.gmra.mrb[0].mxu0 %v1983
        %v2253 = vpop.f32.mrb[0].mxu0
        %v2254 = vadd.f32 %v2017, %v2253
        %v2255 = vpop.f32.mrb[0].mxu0
        %v2256 = vpop.f32.mrb[0].mxu0
        %v2257 = vadd.f32 %v2017, %v2256
        %v2258 = vpop.f32.mrb[0].mxu0
        %2259 = vmatprep.mubr.bf16.mxu0 0
        %2260 = vmatmul.mubr.bf16.gmra.mrb[0].mxu0 %v1984
        %v2261 = vpop.f32.mrb[0].mxu0
        %v2262 = vadd.f32 %v2017, %v2261
        %v2263 = vpop.f32.mrb[0].mxu0
        %v2264 = vpop.f32.mrb[0].mxu0
        %v2265 = vadd.f32 %v2017, %v2264
        %v2266 = vpop.f32.mrb[0].mxu0
        %2267 = vmatprep.mubr.bf16.mxu0 0
        %2268 = vmatmul.mubr.bf16.gmra.mrb[0].mxu0 %v1985
        %v2269 = vpop.f32.mrb[0].mxu0
        %v2270 = vadd.f32 %v2017, %v2269
        %v2271 = vpop.f32.mrb[0].mxu0
        %v2272 = vpop.f32.mrb[0].mxu0
        %v2273 = vadd.f32 %v2017, %v2272
        %v2274 = vpop.f32.mrb[0].mxu0
        %2275 = vmatprep.mubr.bf16.mxu0 0
        %2276 = vmatmul.mubr.bf16.gmra.mrb[0].mxu0 %v1986
        %v2277 = vpop.f32.mrb[0].mxu0
        %v2278 = vadd.f32 %v2017, %v2277
        %v2279 = vpop.f32.mrb[0].mxu0
        %v2280 = vpop.f32.mrb[0].mxu0
        %v2281 = vadd.f32 %v2017, %v2280
        %v2282 = vpop.f32.mrb[0].mxu0
        %2283 = vmatprep.mubr.bf16.mxu0 0
        %2284 = vmatmul.mubr.bf16.gmra.mrb[0].mxu0 %v1987
        %v2285 = vpop.f32.mrb[0].mxu0
        %v2286 = vadd.f32 %v2017, %v2285
        %v2287 = vpop.f32.mrb[0].mxu0
        %v2288 = vpop.f32.mrb[0].mxu0
        %v2289 = vadd.f32 %v2017, %v2288
        %v2290 = vpop.f32.mrb[0].mxu0
        %2291 = vmatprep.mubr.bf16.mxu0 0
        %2292 = vmatmul.mubr.bf16.gmra.mrb[0].mxu0 %v1988
        %v2293 = vpop.f32.mrb[0].mxu0
        %v2294 = vadd.f32 %v2017, %v2293
        %v2295 = vpop.f32.mrb[0].mxu0
        %v2296 = vpop.f32.mrb[0].mxu0
        %v2297 = vadd.f32 %v2017, %v2296
        %v2298 = vpop.f32.mrb[0].mxu0
        %2299 = vmatprep.mubr.bf16.mxu0 0
        %2300 = vmatmul.mubr.bf16.gmra.mrb[0].mxu0 %v1989
        %v2301 = vpop.f32.mrb[0].mxu0
        %v2302 = vadd.f32 %v2017, %v2301
        %v2303 = vpop.f32.mrb[0].mxu0
        %v2304 = vpop.f32.mrb[0].mxu0
        %v2305 = vadd.f32 %v2017, %v2304
        %v2306 = vpop.f32.mrb[0].mxu0
        %2307 = vmatprep.mubr.bf16.mxu0 0
        %2308 = vmatmul.mubr.bf16.gmra.mrb[0].mxu0 %v1990
        %v2309 = vpop.f32.mrb[0].mxu0
        %v2310 = vadd.f32 %v2017, %v2309
        %v2311 = vpop.f32.mrb[0].mxu0
        %v2312 = vpop.f32.mrb[0].mxu0
        %v2313 = vadd.f32 %v2017, %v2312
        %v2314 = vpop.f32.mrb[0].mxu0
        %2315 = vmatprep.mubr.bf16.mxu0 0
        %2316 = vmatmul.mubr.bf16.gmra.mrb[0].mxu0 %v1991
        %v2317 = vpop.f32.mrb[0].mxu0
        %v2318 = vadd.f32 %v2017, %v2317
        %v2319 = vpop.f32.mrb[0].mxu0
        %v2320 = vpop.f32.mrb[0].mxu0
        %v2321 = vadd.f32 %v2017, %v2320
        %v2322 = vpop.f32.mrb[0].mxu0
        %2323 = vmatprep.mubr.bf16.mxu0 0
        %2324 = vmatmul.mubr.bf16.gmra.mrb[0].mxu0 %v1992
        %v2325 = vpop.f32.mrb[0].mxu0
        %v2326 = vadd.f32 %v2017, %v2325
        %v2327 = vpop.f32.mrb[0].mxu0
        %v2328 = vpop.f32.mrb[0].mxu0
        %v2329 = vadd.f32 %v2017, %v2328
        %v2330 = vpop.f32.mrb[0].mxu0
        %2331 = vmatprep.mubr.bf16.mxu0 0
        %2332 = vmatmul.mubr.bf16.gmra.mrb[0].mxu0 %v1993
        %v2333 = vpop.f32.mrb[0].mxu0
        %v2334 = vadd.f32 %v2017, %v2333
        %v2335 = vpop.f32.mrb[0].mxu0
        %v2336 = vpop.f32.mrb[0].mxu0
        %v2337 = vadd.f32 %v2017, %v2336
        %v2338 = vpop.f32.mrb[0].mxu0
        %2339 = vmatprep.mubr.bf16.mxu0 0
        %2340 = vmatmul.mubr.bf16.gmra.mrb[0].mxu0 %v1994
        %v2341 = vpop.f32.mrb[0].mxu0
        %v2342 = vadd.f32 %v2017, %v2341
        %v2343 = vpop.f32.mrb[0].mxu0
        %v2344 = vpop.f32.mrb[0].mxu0
        %v2345 = vadd.f32 %v2017, %v2344
        %v2346 = vpop.f32.mrb[0].mxu0
        %2347 = vmatprep.mubr.bf16.mxu0 0
        %2348 = vmatmul.mubr.bf16.gmra.mrb[0].mxu0 %v1995
        %v2349 = vpop.f32.mrb[0].mxu0
        %v2350 = vadd.f32 %v2017, %v2349
        %v2351 = vpop.f32.mrb[0].mxu0
        %v2352 = vpop.f32.mrb[0].mxu0
        %v2353 = vadd.f32 %v2017, %v2352
        %v2354 = vpop.f32.mrb[0].mxu0
        %2355 = vdwg.mxu0
        %2356 = vst.msk [vmem:[%s334] sm:$0xff] %vm602, %v2102
        %2357 = vst.msk [vmem:[%s334 + $0x8] sm:$0xff] %vm602, %v2105
        %2358 = vst.msk [vmem:[%s334 + $0x10] sm:$0xff] %vm602, %v2110
        %2359 = vst.msk [vmem:[%s334 + $0x18] sm:$0xff] %vm602, %v2113
        %2360 = vst.msk [vmem:[%s334 + $0x20] sm:$0xff] %vm602, %v2118
        %2361 = vst.msk [vmem:[%s334 + $0x28] sm:$0xff] %vm602, %v2121
        %2362 = vst.msk [vmem:[%s334 + $0x30] sm:$0xff] %vm602, %v2126
        %2363 = vst.msk [vmem:[%s334 + $0x38] sm:$0xff] %vm602, %v2129
        %2364 = vst.msk [vmem:[%s334 + $0x40] sm:$0xff] %vm602, %v2134
        %2365 = vst.msk [vmem:[%s334 + $0x48] sm:$0xff] %vm602, %v2137
        %2366 = vst.msk [vmem:[%s334 + $0x50] sm:$0xff] %vm602, %v2142
        %2367 = vst.msk [vmem:[%s334 + $0x58] sm:$0xff] %vm602, %v2145
        %2368 = vst.msk [vmem:[%s334 + $0x60] sm:$0xff] %vm602, %v2150
        %2369 = vst.msk [vmem:[%s334 + $0x68] sm:$0xff] %vm602, %v2153
        %2370 = vst.msk [vmem:[%s334 + $0x70] sm:$0xff] %vm602, %v2158
        %2371 = vst.msk [vmem:[%s334 + $0x78] sm:$0xff] %vm602, %v2161
        %2372 = vst.msk [vmem:[%s334 + $0x80] sm:$0xff] %vm602, %v2166
        %2373 = vst.msk [vmem:[%s334 + $0x88] sm:$0xff] %vm602, %v2169
        %2374 = vst.msk [vmem:[%s334 + $0x90] sm:$0xff] %vm602, %v2174
        %2375 = vst.msk [vmem:[%s334 + $0x98] sm:$0xff] %vm602, %v2177
        %2376 = vst.msk [vmem:[%s334 + $0xa0] sm:$0xff] %vm602, %v2182
        %2377 = vst.msk [vmem:[%s334 + $0xa8] sm:$0xff] %vm602, %v2185
        %2378 = vst.msk [vmem:[%s334 + $0xb0] sm:$0xff] %vm602, %v2190
        %2379 = vst.msk [vmem:[%s334 + $0xb8] sm:$0xff] %vm602, %v2193
        %2380 = vst.msk [vmem:[%s334 + $0xc0] sm:$0xff] %vm602, %v2198
        %2381 = vst.msk [vmem:[%s334 + $0xc8] sm:$0xff] %vm602, %v2201
        %2382 = vst.msk [vmem:[%s334 + $0xd0] sm:$0xff] %vm602, %v2206
        %2383 = vst.msk [vmem:[%s334 + $0xd8] sm:$0xff] %vm602, %v2209
        %2384 = vst.msk [vmem:[%s334 + $0xe0] sm:$0xff] %vm602, %v2214
        %2385 = vst.msk [vmem:[%s334 + $0xe8] sm:$0xff] %vm602, %v2217
        %2386 = vst.msk [vmem:[%s334 + $0xf0] sm:$0xff] %vm602, %v2222
        %2387 = vst.msk [vmem:[%s334 + $0xf8] sm:$0xff] %vm602, %v2225
        %2388 = vst.msk [vmem:[%s334 + $0x100] sm:$0xff] %vm602, %v2230
        %2389 = vst.msk [vmem:[%s334 + $0x108] sm:$0xff] %vm602, %v2233
        %2390 = vst.msk [vmem:[%s334 + $0x110] sm:$0xff] %vm602, %v2238
        %2391 = vst.msk [vmem:[%s334 + $0x118] sm:$0xff] %vm602, %v2241
        %2392 = vst.msk [vmem:[%s334 + $0x120] sm:$0xff] %vm602, %v2246
        %2393 = vst.msk [vmem:[%s334 + $0x128] sm:$0xff] %vm602, %v2249
        %2394 = vst.msk [vmem:[%s334 + $0x130] sm:$0xff] %vm602, %v2254
        %2395 = vst.msk [vmem:[%s334 + $0x138] sm:$0xff] %vm602, %v2257
        %2396 = vst.msk [vmem:[%s334 + $0x140] sm:$0xff] %vm602, %v2262
        %2397 = vst.msk [vmem:[%s334 + $0x148] sm:$0xff] %vm602, %v2265
        %2398 = vst.msk [vmem:[%s334 + $0x150] sm:$0xff] %vm602, %v2270
        %2399 = vst.msk [vmem:[%s334 + $0x158] sm:$0xff] %vm602, %v2273
        %2400 = vst.msk [vmem:[%s334 + $0x160] sm:$0xff] %vm602, %v2278
        %2401 = vst.msk [vmem:[%s334 + $0x168] sm:$0xff] %vm602, %v2281
        %2402 = vst.msk [vmem:[%s334 + $0x170] sm:$0xff] %vm602, %v2286
        %2403 = vst.msk [vmem:[%s334 + $0x178] sm:$0xff] %vm602, %v2289
        %2404 = vst.msk [vmem:[%s334 + $0x180] sm:$0xff] %vm602, %v2294
        %2405 = vst.msk [vmem:[%s334 + $0x188] sm:$0xff] %vm602, %v2297
        %2406 = vst.msk [vmem:[%s334 + $0x190] sm:$0xff] %vm602, %v2302
        %2407 = vst.msk [vmem:[%s334 + $0x198] sm:$0xff] %vm602, %v2305
        %2408 = vst.msk [vmem:[%s334 + $0x1a0] sm:$0xff] %vm602, %v2310
        %2409 = vst.msk [vmem:[%s334 + $0x1a8] sm:$0xff] %vm602, %v2313
        %2410 = vst.msk [vmem:[%s334 + $0x1b0] sm:$0xff] %vm602, %v2318
        %2411 = vst.msk [vmem:[%s334 + $0x1b8] sm:$0xff] %vm602, %v2321
        %2412 = vst.msk [vmem:[%s334 + $0x1c0] sm:$0xff] %vm602, %v2326
        %2413 = vst.msk [vmem:[%s334 + $0x1c8] sm:$0xff] %vm602, %v2329
        %2414 = vst.msk [vmem:[%s334 + $0x1d0] sm:$0xff] %vm602, %v2334
        %2415 = vst.msk [vmem:[%s334 + $0x1d8] sm:$0xff] %vm602, %v2337
        %2416 = vst.msk [vmem:[%s334 + $0x1e0] sm:$0xff] %vm602, %v2342
        %2417 = vst.msk [vmem:[%s334 + $0x1e8] sm:$0xff] %vm602, %v2345
        %2418 = vst.msk [vmem:[%s334 + $0x1f0] sm:$0xff] %vm602, %v2350
        %2419 = vst.msk [vmem:[%s334 + $0x1f8] sm:$0xff] %vm602, %v2353
        %s2420 = sand.u32 %s222, 1
        %s2421 = sand.u32 %s222, 1
        %s2422 = smul.addr %s2421, 512
        %s2423 = scalar_lea.vmem [#allocation2], %s2422
        // Predicated region
        $region57: #{autoencoder_forward.1} parent=55 // pred_check
          %p2424 = pneg %p232
        $region58: #{autoencoder_forward.1} parent=55 // pred_check_branch
          %2426 = sbr.rel (%p2424) target = $region60
        $region59: #{autoencoder_forward.1} parent=55 // pred_region
          %s2427 = smul.u32 64, %s20
          %s2428 = ssub.s32 250, %s2427
          %p2429 = scmp.lt.s32.totalorder %s2428, 64
          %s2430 = scalar_select %p2429, %s2428, 64
          %s2431 = smul.u32 128, %s2430
          %p2432 = scmp.ne.s32.totalorder 0, %s2431
          %s2433 = smul.addr %s2427, 8
          %s2434 = scalar_lea.vmem %s9, %s2433
          // Predicated region
          $region61: #{autoencoder_forward.1} parent=59 // pred_check
            %p2435 = pneg %p2432
          $region62: #{autoencoder_forward.1} parent=59 // pred_check_branch
            %2437 = sbr.rel (%p2435) target = $region64
          $region63: #{autoencoder_forward.1} parent=59 // pred_region
            // Predicated region
            $region65: #{autoencoder_forward.1} parent=63 // pred_check
              _
            $region66: #{autoencoder_forward.1} parent=63 // pred_check_branch
              %2439 = sbr.rel (0) target = $region68
            $region67: #{autoencoder_forward.1} parent=63 // pred_region
              // Predicated region
              $region87: #{autoencoder_forward.1} parent=67 // pred_check
                _
              $region88: #{autoencoder_forward.1} parent=67 // pred_check_branch
                %2614 = sbr.rel (0) target = $region90
              $region89: #{autoencoder_forward.1} parent=67 // pred_region
                %s2615 = sshrl.u32 %s2430, 6
                // While loop
                $region91: #{autoencoder_forward.1} parent=89 // loop_pre_header
                  _
                $region92: #{autoencoder_forward.1} parent=89 // loop_header
                  %s2617 = sphi 0, %s2619
                  %p2618 = scmp.ge.s32.totalorder %s2617, %s2615
                  %s2622 = sphi 0, %s2755
                  %s2623 = sphi %s2423, %s2758
                  %s2624 = sphi %s2434, %s2759
                $region93: #{autoencoder_forward.1} parent=89 // loop_header_branch
                  %2621 = sbr.rel (%p2618) target = $region97
                $region94: #{autoencoder_forward.1} parent=89 // loop_body
                  %v2625 = vld [vmem:[%s2623] sm:$0xff]
                  %2626 = vst [vmem:[%s2624] sm:$0xff] %v2625
                  %v2627 = vld [vmem:[%s2623 + $0x8] sm:$0xff]
                  %2628 = vst [vmem:[%s2624 + $0x8] sm:$0xff] %v2627
                  %v2629 = vld [vmem:[%s2623 + $0x10] sm:$0xff]
                  %2630 = vst [vmem:[%s2624 + $0x10] sm:$0xff] %v2629
                  %v2631 = vld [vmem:[%s2623 + $0x18] sm:$0xff]
                  %2632 = vst [vmem:[%s2624 + $0x18] sm:$0xff] %v2631
                  %v2633 = vld [vmem:[%s2623 + $0x20] sm:$0xff]
                  %2634 = vst [vmem:[%s2624 + $0x20] sm:$0xff] %v2633
                  %v2635 = vld [vmem:[%s2623 + $0x28] sm:$0xff]
                  %2636 = vst [vmem:[%s2624 + $0x28] sm:$0xff] %v2635
                  %v2637 = vld [vmem:[%s2623 + $0x30] sm:$0xff]
                  %2638 = vst [vmem:[%s2624 + $0x30] sm:$0xff] %v2637
                  %v2639 = vld [vmem:[%s2623 + $0x38] sm:$0xff]
                  %2640 = vst [vmem:[%s2624 + $0x38] sm:$0xff] %v2639
                  %v2641 = vld [vmem:[%s2623 + $0x40] sm:$0xff]
                  %2642 = vst [vmem:[%s2624 + $0x40] sm:$0xff] %v2641
                  %v2643 = vld [vmem:[%s2623 + $0x48] sm:$0xff]
                  %2644 = vst [vmem:[%s2624 + $0x48] sm:$0xff] %v2643
                  %v2645 = vld [vmem:[%s2623 + $0x50] sm:$0xff]
                  %2646 = vst [vmem:[%s2624 + $0x50] sm:$0xff] %v2645
                  %v2647 = vld [vmem:[%s2623 + $0x58] sm:$0xff]
                  %2648 = vst [vmem:[%s2624 + $0x58] sm:$0xff] %v2647
                  %v2649 = vld [vmem:[%s2623 + $0x60] sm:$0xff]
                  %2650 = vst [vmem:[%s2624 + $0x60] sm:$0xff] %v2649
                  %v2651 = vld [vmem:[%s2623 + $0x68] sm:$0xff]
                  %2652 = vst [vmem:[%s2624 + $0x68] sm:$0xff] %v2651
                  %v2653 = vld [vmem:[%s2623 + $0x70] sm:$0xff]
                  %2654 = vst [vmem:[%s2624 + $0x70] sm:$0xff] %v2653
                  %v2655 = vld [vmem:[%s2623 + $0x78] sm:$0xff]
                  %2656 = vst [vmem:[%s2624 + $0x78] sm:$0xff] %v2655
                  %v2657 = vld [vmem:[%s2623 + $0x80] sm:$0xff]
                  %2658 = vst [vmem:[%s2624 + $0x80] sm:$0xff] %v2657
                  %v2659 = vld [vmem:[%s2623 + $0x88] sm:$0xff]
                  %2660 = vst [vmem:[%s2624 + $0x88] sm:$0xff] %v2659
                  %v2661 = vld [vmem:[%s2623 + $0x90] sm:$0xff]
                  %2662 = vst [vmem:[%s2624 + $0x90] sm:$0xff] %v2661
                  %v2663 = vld [vmem:[%s2623 + $0x98] sm:$0xff]
                  %2664 = vst [vmem:[%s2624 + $0x98] sm:$0xff] %v2663
                  %v2665 = vld [vmem:[%s2623 + $0xa0] sm:$0xff]
                  %2666 = vst [vmem:[%s2624 + $0xa0] sm:$0xff] %v2665
                  %v2667 = vld [vmem:[%s2623 + $0xa8] sm:$0xff]
                  %2668 = vst [vmem:[%s2624 + $0xa8] sm:$0xff] %v2667
                  %v2669 = vld [vmem:[%s2623 + $0xb0] sm:$0xff]
                  %2670 = vst [vmem:[%s2624 + $0xb0] sm:$0xff] %v2669
                  %v2671 = vld [vmem:[%s2623 + $0xb8] sm:$0xff]
                  %2672 = vst [vmem:[%s2624 + $0xb8] sm:$0xff] %v2671
                  %v2673 = vld [vmem:[%s2623 + $0xc0] sm:$0xff]
                  %2674 = vst [vmem:[%s2624 + $0xc0] sm:$0xff] %v2673
                  %v2675 = vld [vmem:[%s2623 + $0xc8] sm:$0xff]
                  %2676 = vst [vmem:[%s2624 + $0xc8] sm:$0xff] %v2675
                  %v2677 = vld [vmem:[%s2623 + $0xd0] sm:$0xff]
                  %2678 = vst [vmem:[%s2624 + $0xd0] sm:$0xff] %v2677
                  %v2679 = vld [vmem:[%s2623 + $0xd8] sm:$0xff]
                  %2680 = vst [vmem:[%s2624 + $0xd8] sm:$0xff] %v2679
                  %v2681 = vld [vmem:[%s2623 + $0xe0] sm:$0xff]
                  %2682 = vst [vmem:[%s2624 + $0xe0] sm:$0xff] %v2681
                  %v2683 = vld [vmem:[%s2623 + $0xe8] sm:$0xff]
                  %2684 = vst [vmem:[%s2624 + $0xe8] sm:$0xff] %v2683
                  %v2685 = vld [vmem:[%s2623 + $0xf0] sm:$0xff]
                  %2686 = vst [vmem:[%s2624 + $0xf0] sm:$0xff] %v2685
                  %v2687 = vld [vmem:[%s2623 + $0xf8] sm:$0xff]
                  %2688 = vst [vmem:[%s2624 + $0xf8] sm:$0xff] %v2687
                  %v2689 = vld [vmem:[%s2623 + $0x100] sm:$0xff]
                  %2690 = vst [vmem:[%s2624 + $0x100] sm:$0xff] %v2689
                  %v2691 = vld [vmem:[%s2623 + $0x108] sm:$0xff]
                  %2692 = vst [vmem:[%s2624 + $0x108] sm:$0xff] %v2691
                  %v2693 = vld [vmem:[%s2623 + $0x110] sm:$0xff]
                  %2694 = vst [vmem:[%s2624 + $0x110] sm:$0xff] %v2693
                  %v2695 = vld [vmem:[%s2623 + $0x118] sm:$0xff]
                  %2696 = vst [vmem:[%s2624 + $0x118] sm:$0xff] %v2695
                  %v2697 = vld [vmem:[%s2623 + $0x120] sm:$0xff]
                  %2698 = vst [vmem:[%s2624 + $0x120] sm:$0xff] %v2697
                  %v2699 = vld [vmem:[%s2623 + $0x128] sm:$0xff]
                  %2700 = vst [vmem:[%s2624 + $0x128] sm:$0xff] %v2699
                  %v2701 = vld [vmem:[%s2623 + $0x130] sm:$0xff]
                  %2702 = vst [vmem:[%s2624 + $0x130] sm:$0xff] %v2701
                  %v2703 = vld [vmem:[%s2623 + $0x138] sm:$0xff]
                  %2704 = vst [vmem:[%s2624 + $0x138] sm:$0xff] %v2703
                  %v2705 = vld [vmem:[%s2623 + $0x140] sm:$0xff]
                  %2706 = vst [vmem:[%s2624 + $0x140] sm:$0xff] %v2705
                  %v2707 = vld [vmem:[%s2623 + $0x148] sm:$0xff]
                  %2708 = vst [vmem:[%s2624 + $0x148] sm:$0xff] %v2707
                  %v2709 = vld [vmem:[%s2623 + $0x150] sm:$0xff]
                  %2710 = vst [vmem:[%s2624 + $0x150] sm:$0xff] %v2709
                  %v2711 = vld [vmem:[%s2623 + $0x158] sm:$0xff]
                  %2712 = vst [vmem:[%s2624 + $0x158] sm:$0xff] %v2711
                  %v2713 = vld [vmem:[%s2623 + $0x160] sm:$0xff]
                  %2714 = vst [vmem:[%s2624 + $0x160] sm:$0xff] %v2713
                  %v2715 = vld [vmem:[%s2623 + $0x168] sm:$0xff]
                  %2716 = vst [vmem:[%s2624 + $0x168] sm:$0xff] %v2715
                  %v2717 = vld [vmem:[%s2623 + $0x170] sm:$0xff]
                  %2718 = vst [vmem:[%s2624 + $0x170] sm:$0xff] %v2717
                  %v2719 = vld [vmem:[%s2623 + $0x178] sm:$0xff]
                  %2720 = vst [vmem:[%s2624 + $0x178] sm:$0xff] %v2719
                  %v2721 = vld [vmem:[%s2623 + $0x180] sm:$0xff]
                  %2722 = vst [vmem:[%s2624 + $0x180] sm:$0xff] %v2721
                  %v2723 = vld [vmem:[%s2623 + $0x188] sm:$0xff]
                  %2724 = vst [vmem:[%s2624 + $0x188] sm:$0xff] %v2723
                  %v2725 = vld [vmem:[%s2623 + $0x190] sm:$0xff]
                  %2726 = vst [vmem:[%s2624 + $0x190] sm:$0xff] %v2725
                  %v2727 = vld [vmem:[%s2623 + $0x198] sm:$0xff]
                  %2728 = vst [vmem:[%s2624 + $0x198] sm:$0xff] %v2727
                  %v2729 = vld [vmem:[%s2623 + $0x1a0] sm:$0xff]
                  %2730 = vst [vmem:[%s2624 + $0x1a0] sm:$0xff] %v2729
                  %v2731 = vld [vmem:[%s2623 + $0x1a8] sm:$0xff]
                  %2732 = vst [vmem:[%s2624 + $0x1a8] sm:$0xff] %v2731
                  %v2733 = vld [vmem:[%s2623 + $0x1b0] sm:$0xff]
                  %2734 = vst [vmem:[%s2624 + $0x1b0] sm:$0xff] %v2733
                  %v2735 = vld [vmem:[%s2623 + $0x1b8] sm:$0xff]
                  %2736 = vst [vmem:[%s2624 + $0x1b8] sm:$0xff] %v2735
                  %v2737 = vld [vmem:[%s2623 + $0x1c0] sm:$0xff]
                  %2738 = vst [vmem:[%s2624 + $0x1c0] sm:$0xff] %v2737
                  %v2739 = vld [vmem:[%s2623 + $0x1c8] sm:$0xff]
                  %2740 = vst [vmem:[%s2624 + $0x1c8] sm:$0xff] %v2739
                  %v2741 = vld [vmem:[%s2623 + $0x1d0] sm:$0xff]
                  %2742 = vst [vmem:[%s2624 + $0x1d0] sm:$0xff] %v2741
                  %v2743 = vld [vmem:[%s2623 + $0x1d8] sm:$0xff]
                  %2744 = vst [vmem:[%s2624 + $0x1d8] sm:$0xff] %v2743
                  %v2745 = vld [vmem:[%s2623 + $0x1e0] sm:$0xff]
                  %2746 = vst [vmem:[%s2624 + $0x1e0] sm:$0xff] %v2745
                  %v2747 = vld [vmem:[%s2623 + $0x1e8] sm:$0xff]
                  %2748 = vst [vmem:[%s2624 + $0x1e8] sm:$0xff] %v2747
                  %v2749 = vld [vmem:[%s2623 + $0x1f0] sm:$0xff]
                  %2750 = vst [vmem:[%s2624 + $0x1f0] sm:$0xff] %v2749
                  %v2751 = vld [vmem:[%s2623 + $0x1f8] sm:$0xff]
                  %2752 = vst [vmem:[%s2624 + $0x1f8] sm:$0xff] %v2751
                  %s2753 = sadd.s32 1, %s2622
                  %p2754 = scmp.ge.s32.totalorder %s2753, %s2615
                  %s2755 = scalar_select %p2754, 0, %s2753
                  %s2756 = smul.u32 %s2755, 512
                  %s2757 = smul.u32 %s2755, 512
                  %s2758 = scalar_lea.vmem %s2423, %s2756 [#allocation2]
                  %s2759 = scalar_lea.vmem %s2434, %s2757
                $region95: #{autoencoder_forward.1} parent=89 // loop_footer
                  %s2619 = sadd.s32 %s2617, 1
                $region96: #{autoencoder_forward.1} parent=89 // loop_footer_branch
                  %2616 = sbr.rel target = $region92
                $region97: #{autoencoder_forward.1} parent=89 // loop_exit
                  _
                %s2760 = sshrl.u32 %s2430, 6
                %s2761 = sand.u32 %s2430, 63
                %s2762 = smul.u32 %s2760, 64
                %s2763 = smul.u32 8, %s2762
                %s2764 = scalar_lea.vmem %s2423, %s2763 [#allocation2]
                %s2765 = smul.u32 8, %s2762
                %s2766 = scalar_lea.vmem %s2434, %s2765
                // While loop
                $region98: #{autoencoder_forward.1} parent=89 // loop_pre_header
                  _
                $region99: #{autoencoder_forward.1} parent=89 // loop_header
                  %s2768 = sphi 0, %s2770
                  %p2769 = scmp.ge.s32.totalorder %s2768, %s2761
                  %s2773 = sphi 0, %s2780
                  %s2774 = sphi %s2764, %s2783
                  %s2775 = sphi %s2766, %s2784
                $region100: #{autoencoder_forward.1} parent=89 // loop_header_branch
                  %2772 = sbr.rel (%p2769) target = $region104
                $region101: #{autoencoder_forward.1} parent=89 // loop_body
                  %v2776 = vld [vmem:[%s2774] sm:$0xff]
                  %2777 = vst [vmem:[%s2775] sm:$0xff] %v2776
                  %s2778 = sadd.s32 1, %s2773
                  %p2779 = scmp.ge.s32.totalorder %s2778, %s2761
                  %s2780 = scalar_select %p2779, 0, %s2778
                  %s2781 = smul.u32 %s2780, 8
                  %s2782 = smul.u32 %s2780, 8
                  %s2783 = scalar_lea.vmem %s2764, %s2781 [#allocation2]
                  %s2784 = scalar_lea.vmem %s2766, %s2782
                $region102: #{autoencoder_forward.1} parent=89 // loop_footer
                  %s2770 = sadd.s32 %s2768, 1
                $region103: #{autoencoder_forward.1} parent=89 // loop_footer_branch
                  %2767 = sbr.rel target = $region99
                $region104: #{autoencoder_forward.1} parent=89 // loop_exit
                  _
              $region90: #{autoencoder_forward.1} parent=67 // pred_fallthru
                _
              // Predicated region
              $region105: #{autoencoder_forward.1} parent=67 // pred_check
                _
              $region106: #{autoencoder_forward.1} parent=67 // pred_check_branch
                %2786 = sbr.rel target = $region108
              $region107: #{autoencoder_forward.1} parent=67 // pred_region
                _
              $region108: #{autoencoder_forward.1} parent=67 // pred_fallthru
                _
            $region68: #{autoencoder_forward.1} parent=63 // pred_fallthru
              _
            // Predicated region
            $region69: #{autoencoder_forward.1} parent=63 // pred_check
              _
            $region70: #{autoencoder_forward.1} parent=63 // pred_check_branch
              %2441 = sbr.rel target = $region72
            $region71: #{autoencoder_forward.1} parent=63 // pred_region
              %s2443 = sshrl.u32 %s2430, 6
              // While loop
              $region73: #{autoencoder_forward.1} parent=71 // loop_pre_header
                _
              $region74: #{autoencoder_forward.1} parent=71 // loop_header
                %s2445 = sphi 0, %s2447
                %p2446 = scmp.ge.s32.totalorder %s2445, %s2443
                %s2450 = sphi 0, %s2583
                %s2451 = sphi %s2423, %s2586
                %s2452 = sphi %s2434, %s2587
              $region75: #{autoencoder_forward.1} parent=71 // loop_header_branch
                %2449 = sbr.rel (%p2446) target = $region79
              $region76: #{autoencoder_forward.1} parent=71 // loop_body
                %v2453 = vld [vmem:[%s2451] sm:$0xff]
                %2454 = vst [vmem:[%s2452] sm:$0xff] %v2453
                %v2455 = vld [vmem:[%s2451 + $0x8] sm:$0xff]
                %2456 = vst [vmem:[%s2452 + $0x8] sm:$0xff] %v2455
                %v2457 = vld [vmem:[%s2451 + $0x10] sm:$0xff]
                %2458 = vst [vmem:[%s2452 + $0x10] sm:$0xff] %v2457
                %v2459 = vld [vmem:[%s2451 + $0x18] sm:$0xff]
                %2460 = vst [vmem:[%s2452 + $0x18] sm:$0xff] %v2459
                %v2461 = vld [vmem:[%s2451 + $0x20] sm:$0xff]
                %2462 = vst [vmem:[%s2452 + $0x20] sm:$0xff] %v2461
                %v2463 = vld [vmem:[%s2451 + $0x28] sm:$0xff]
                %2464 = vst [vmem:[%s2452 + $0x28] sm:$0xff] %v2463
                %v2465 = vld [vmem:[%s2451 + $0x30] sm:$0xff]
                %2466 = vst [vmem:[%s2452 + $0x30] sm:$0xff] %v2465
                %v2467 = vld [vmem:[%s2451 + $0x38] sm:$0xff]
                %2468 = vst [vmem:[%s2452 + $0x38] sm:$0xff] %v2467
                %v2469 = vld [vmem:[%s2451 + $0x40] sm:$0xff]
                %2470 = vst [vmem:[%s2452 + $0x40] sm:$0xff] %v2469
                %v2471 = vld [vmem:[%s2451 + $0x48] sm:$0xff]
                %2472 = vst [vmem:[%s2452 + $0x48] sm:$0xff] %v2471
                %v2473 = vld [vmem:[%s2451 + $0x50] sm:$0xff]
                %2474 = vst [vmem:[%s2452 + $0x50] sm:$0xff] %v2473
                %v2475 = vld [vmem:[%s2451 + $0x58] sm:$0xff]
                %2476 = vst [vmem:[%s2452 + $0x58] sm:$0xff] %v2475
                %v2477 = vld [vmem:[%s2451 + $0x60] sm:$0xff]
                %2478 = vst [vmem:[%s2452 + $0x60] sm:$0xff] %v2477
                %v2479 = vld [vmem:[%s2451 + $0x68] sm:$0xff]
                %2480 = vst [vmem:[%s2452 + $0x68] sm:$0xff] %v2479
                %v2481 = vld [vmem:[%s2451 + $0x70] sm:$0xff]
                %2482 = vst [vmem:[%s2452 + $0x70] sm:$0xff] %v2481
                %v2483 = vld [vmem:[%s2451 + $0x78] sm:$0xff]
                %2484 = vst [vmem:[%s2452 + $0x78] sm:$0xff] %v2483
                %v2485 = vld [vmem:[%s2451 + $0x80] sm:$0xff]
                %2486 = vst [vmem:[%s2452 + $0x80] sm:$0xff] %v2485
                %v2487 = vld [vmem:[%s2451 + $0x88] sm:$0xff]
                %2488 = vst [vmem:[%s2452 + $0x88] sm:$0xff] %v2487
                %v2489 = vld [vmem:[%s2451 + $0x90] sm:$0xff]
                %2490 = vst [vmem:[%s2452 + $0x90] sm:$0xff] %v2489
                %v2491 = vld [vmem:[%s2451 + $0x98] sm:$0xff]
                %2492 = vst [vmem:[%s2452 + $0x98] sm:$0xff] %v2491
                %v2493 = vld [vmem:[%s2451 + $0xa0] sm:$0xff]
                %2494 = vst [vmem:[%s2452 + $0xa0] sm:$0xff] %v2493
                %v2495 = vld [vmem:[%s2451 + $0xa8] sm:$0xff]
                %2496 = vst [vmem:[%s2452 + $0xa8] sm:$0xff] %v2495
                %v2497 = vld [vmem:[%s2451 + $0xb0] sm:$0xff]
                %2498 = vst [vmem:[%s2452 + $0xb0] sm:$0xff] %v2497
                %v2499 = vld [vmem:[%s2451 + $0xb8] sm:$0xff]
                %2500 = vst [vmem:[%s2452 + $0xb8] sm:$0xff] %v2499
                %v2501 = vld [vmem:[%s2451 + $0xc0] sm:$0xff]
                %2502 = vst [vmem:[%s2452 + $0xc0] sm:$0xff] %v2501
                %v2503 = vld [vmem:[%s2451 + $0xc8] sm:$0xff]
                %2504 = vst [vmem:[%s2452 + $0xc8] sm:$0xff] %v2503
                %v2505 = vld [vmem:[%s2451 + $0xd0] sm:$0xff]
                %2506 = vst [vmem:[%s2452 + $0xd0] sm:$0xff] %v2505
                %v2507 = vld [vmem:[%s2451 + $0xd8] sm:$0xff]
                %2508 = vst [vmem:[%s2452 + $0xd8] sm:$0xff] %v2507
                %v2509 = vld [vmem:[%s2451 + $0xe0] sm:$0xff]
                %2510 = vst [vmem:[%s2452 + $0xe0] sm:$0xff] %v2509
                %v2511 = vld [vmem:[%s2451 + $0xe8] sm:$0xff]
                %2512 = vst [vmem:[%s2452 + $0xe8] sm:$0xff] %v2511
                %v2513 = vld [vmem:[%s2451 + $0xf0] sm:$0xff]
                %2514 = vst [vmem:[%s2452 + $0xf0] sm:$0xff] %v2513
                %v2515 = vld [vmem:[%s2451 + $0xf8] sm:$0xff]
                %2516 = vst [vmem:[%s2452 + $0xf8] sm:$0xff] %v2515
                %v2517 = vld [vmem:[%s2451 + $0x100] sm:$0xff]
                %2518 = vst [vmem:[%s2452 + $0x100] sm:$0xff] %v2517
                %v2519 = vld [vmem:[%s2451 + $0x108] sm:$0xff]
                %2520 = vst [vmem:[%s2452 + $0x108] sm:$0xff] %v2519
                %v2521 = vld [vmem:[%s2451 + $0x110] sm:$0xff]
                %2522 = vst [vmem:[%s2452 + $0x110] sm:$0xff] %v2521
                %v2523 = vld [vmem:[%s2451 + $0x118] sm:$0xff]
                %2524 = vst [vmem:[%s2452 + $0x118] sm:$0xff] %v2523
                %v2525 = vld [vmem:[%s2451 + $0x120] sm:$0xff]
                %2526 = vst [vmem:[%s2452 + $0x120] sm:$0xff] %v2525
                %v2527 = vld [vmem:[%s2451 + $0x128] sm:$0xff]
                %2528 = vst [vmem:[%s2452 + $0x128] sm:$0xff] %v2527
                %v2529 = vld [vmem:[%s2451 + $0x130] sm:$0xff]
                %2530 = vst [vmem:[%s2452 + $0x130] sm:$0xff] %v2529
                %v2531 = vld [vmem:[%s2451 + $0x138] sm:$0xff]
                %2532 = vst [vmem:[%s2452 + $0x138] sm:$0xff] %v2531
                %v2533 = vld [vmem:[%s2451 + $0x140] sm:$0xff]
                %2534 = vst [vmem:[%s2452 + $0x140] sm:$0xff] %v2533
                %v2535 = vld [vmem:[%s2451 + $0x148] sm:$0xff]
                %2536 = vst [vmem:[%s2452 + $0x148] sm:$0xff] %v2535
                %v2537 = vld [vmem:[%s2451 + $0x150] sm:$0xff]
                %2538 = vst [vmem:[%s2452 + $0x150] sm:$0xff] %v2537
                %v2539 = vld [vmem:[%s2451 + $0x158] sm:$0xff]
                %2540 = vst [vmem:[%s2452 + $0x158] sm:$0xff] %v2539
                %v2541 = vld [vmem:[%s2451 + $0x160] sm:$0xff]
                %2542 = vst [vmem:[%s2452 + $0x160] sm:$0xff] %v2541
                %v2543 = vld [vmem:[%s2451 + $0x168] sm:$0xff]
                %2544 = vst [vmem:[%s2452 + $0x168] sm:$0xff] %v2543
                %v2545 = vld [vmem:[%s2451 + $0x170] sm:$0xff]
                %2546 = vst [vmem:[%s2452 + $0x170] sm:$0xff] %v2545
                %v2547 = vld [vmem:[%s2451 + $0x178] sm:$0xff]
                %2548 = vst [vmem:[%s2452 + $0x178] sm:$0xff] %v2547
                %v2549 = vld [vmem:[%s2451 + $0x180] sm:$0xff]
                %2550 = vst [vmem:[%s2452 + $0x180] sm:$0xff] %v2549
                %v2551 = vld [vmem:[%s2451 + $0x188] sm:$0xff]
                %2552 = vst [vmem:[%s2452 + $0x188] sm:$0xff] %v2551
                %v2553 = vld [vmem:[%s2451 + $0x190] sm:$0xff]
                %2554 = vst [vmem:[%s2452 + $0x190] sm:$0xff] %v2553
                %v2555 = vld [vmem:[%s2451 + $0x198] sm:$0xff]
                %2556 = vst [vmem:[%s2452 + $0x198] sm:$0xff] %v2555
                %v2557 = vld [vmem:[%s2451 + $0x1a0] sm:$0xff]
                %2558 = vst [vmem:[%s2452 + $0x1a0] sm:$0xff] %v2557
                %v2559 = vld [vmem:[%s2451 + $0x1a8] sm:$0xff]
                %2560 = vst [vmem:[%s2452 + $0x1a8] sm:$0xff] %v2559
                %v2561 = vld [vmem:[%s2451 + $0x1b0] sm:$0xff]
                %2562 = vst [vmem:[%s2452 + $0x1b0] sm:$0xff] %v2561
                %v2563 = vld [vmem:[%s2451 + $0x1b8] sm:$0xff]
                %2564 = vst [vmem:[%s2452 + $0x1b8] sm:$0xff] %v2563
                %v2565 = vld [vmem:[%s2451 + $0x1c0] sm:$0xff]
                %2566 = vst [vmem:[%s2452 + $0x1c0] sm:$0xff] %v2565
                %v2567 = vld [vmem:[%s2451 + $0x1c8] sm:$0xff]
                %2568 = vst [vmem:[%s2452 + $0x1c8] sm:$0xff] %v2567
                %v2569 = vld [vmem:[%s2451 + $0x1d0] sm:$0xff]
                %2570 = vst [vmem:[%s2452 + $0x1d0] sm:$0xff] %v2569
                %v2571 = vld [vmem:[%s2451 + $0x1d8] sm:$0xff]
                %2572 = vst [vmem:[%s2452 + $0x1d8] sm:$0xff] %v2571
                %v2573 = vld [vmem:[%s2451 + $0x1e0] sm:$0xff]
                %2574 = vst [vmem:[%s2452 + $0x1e0] sm:$0xff] %v2573
                %v2575 = vld [vmem:[%s2451 + $0x1e8] sm:$0xff]
                %2576 = vst [vmem:[%s2452 + $0x1e8] sm:$0xff] %v2575
                %v2577 = vld [vmem:[%s2451 + $0x1f0] sm:$0xff]
                %2578 = vst [vmem:[%s2452 + $0x1f0] sm:$0xff] %v2577
                %v2579 = vld [vmem:[%s2451 + $0x1f8] sm:$0xff]
                %2580 = vst [vmem:[%s2452 + $0x1f8] sm:$0xff] %v2579
                %s2581 = sadd.s32 1, %s2450
                %p2582 = scmp.ge.s32.totalorder %s2581, %s2443
                %s2583 = scalar_select %p2582, 0, %s2581
                %s2584 = smul.u32 %s2583, 512
                %s2585 = smul.u32 %s2583, 512
                %s2586 = scalar_lea.vmem %s2423, %s2584 [#allocation2]
                %s2587 = scalar_lea.vmem %s2434, %s2585
              $region77: #{autoencoder_forward.1} parent=71 // loop_footer
                %s2447 = sadd.s32 %s2445, 1
              $region78: #{autoencoder_forward.1} parent=71 // loop_footer_branch
                %2444 = sbr.rel target = $region74
              $region79: #{autoencoder_forward.1} parent=71 // loop_exit
                _
              %s2588 = sshrl.u32 %s2430, 6
              %s2589 = sand.u32 %s2430, 63
              %s2590 = smul.u32 %s2588, 64
              %s2591 = smul.u32 8, %s2590
              %s2592 = scalar_lea.vmem %s2423, %s2591 [#allocation2]
              %s2593 = smul.u32 8, %s2590
              %s2594 = scalar_lea.vmem %s2434, %s2593
              // While loop
              $region80: #{autoencoder_forward.1} parent=71 // loop_pre_header
                _
              $region81: #{autoencoder_forward.1} parent=71 // loop_header
                %s2596 = sphi 0, %s2598
                %p2597 = scmp.ge.s32.totalorder %s2596, %s2589
                %s2601 = sphi 0, %s2608
                %s2602 = sphi %s2592, %s2611
                %s2603 = sphi %s2594, %s2612
              $region82: #{autoencoder_forward.1} parent=71 // loop_header_branch
                %2600 = sbr.rel (%p2597) target = $region86
              $region83: #{autoencoder_forward.1} parent=71 // loop_body
                %v2604 = vld [vmem:[%s2602] sm:$0xff]
                %2605 = vst [vmem:[%s2603] sm:$0xff] %v2604
                %s2606 = sadd.s32 1, %s2601
                %p2607 = scmp.ge.s32.totalorder %s2606, %s2589
                %s2608 = scalar_select %p2607, 0, %s2606
                %s2609 = smul.u32 %s2608, 8
                %s2610 = smul.u32 %s2608, 8
                %s2611 = scalar_lea.vmem %s2592, %s2609 [#allocation2]
                %s2612 = scalar_lea.vmem %s2594, %s2610
              $region84: #{autoencoder_forward.1} parent=71 // loop_footer
                %s2598 = sadd.s32 %s2596, 1
              $region85: #{autoencoder_forward.1} parent=71 // loop_footer_branch
                %2595 = sbr.rel target = $region81
              $region86: #{autoencoder_forward.1} parent=71 // loop_exit
                _
            $region72: #{autoencoder_forward.1} parent=63 // pred_fallthru
              _
          $region64: #{autoencoder_forward.1} parent=59 // pred_fallthru
            _
          %2787 = vnop
        $region60: #{autoencoder_forward.1} parent=55 // pred_fallthru
          _
      $region56: #{autoencoder_forward.1} parent=5 // pred_fallthru
        _
      %p2788 = scmp.le.s32.totalorder 2, %s15
      // Predicated region
      $region109: #{autoencoder_forward.1} parent=5 // pred_check
        %p2789 = pneg %p2788
      $region110: #{autoencoder_forward.1} parent=5 // pred_check_branch
        %2791 = sbr.rel (%p2789) target = $region112
      $region111: #{autoencoder_forward.1} parent=5 // pred_region
        %s2792 = ssub.s32 %s15, 2
        // Predicated region
        $region113: #{autoencoder_forward.1} parent=111 // pred_check
          %p2793 = pneg %p238
        $region114: #{autoencoder_forward.1} parent=111 // pred_check_branch
          %2795 = sbr.rel (%p2793) target = $region116
        $region115: #{autoencoder_forward.1} parent=111 // pred_region
          %s2796 = sand.u32 %s223, 1
          %s2797 = sand.u32 %s223, 1
          %s2798 = smul.addr %s2797, 512
          %s2799 = scalar_lea.vmem [#allocation2], %s2798
        $region116: #{autoencoder_forward.1} parent=111 // pred_fallthru
          _
      $region112: #{autoencoder_forward.1} parent=5 // pred_fallthru
        _
    $region6: #{autoencoder_forward.1} parent=1 // loop_footer
      %s19 = sadd.s32 1, %s15
    $region7: #{autoencoder_forward.1} parent=1 // loop_footer_branch
      %14 = sbr.rel target = $region3
    $region8: #{autoencoder_forward.1} parent=1 // loop_exit
      _

</llo_original>
